<compile_context>
chip_gen: v7x
topology: tpu7x:2x2x1
jax: 0.10.0
libtpu: 0.0.40
codegen_flags: <defaults>
</compile_context>

<pallas_src>
import functools

import jax
import jax.numpy as jnp
from jax import lax
from jax.experimental import pallas as pl
from jax.experimental.pallas import tpu as pltpu


def _conv_kernel(TH, stride, kh, kw, compute_dtype, with_bn_stats, fuse_relu,
                 *refs):
    """Fused implicit-GEMM conv over one (batch, row-tile) grid cell.

    with_bn_stats=True : refs = (x_ref, w_ref, y_ref, stats_ref)
                         y_ref gets raw conv output (f32); stats_ref rows 0/1
                         get per-channel sum / sum-of-squares of this tile.
    with_bn_stats=False: refs = (x_ref, w_ref, bias_ref, y_ref)
                         bias (+ optional ReLU) fused; y_ref in output dtype.
    """
    if with_bn_stats:
        x_ref, w_ref, y_ref, stats_ref = refs
        bias_ref = None
    else:
        x_ref, w_ref, bias_ref, y_ref = refs
        stats_ref = None

    Cin = x_ref.shape[-1]              # x_ref: (Hp, Wp, Cin), VMEM resident
    R, Cpad = y_ref.shape              # R = TH * Wout
    Wout = R // TH

    t = pl.program_id(1)
    row0 = t * (TH * stride)
    row_span = (TH - 1) * stride + 1
    col_span = (Wout - 1) * stride + 1

    acc = jnp.zeros((R, Cpad), jnp.float32)
    for ky in range(kh):
        # One dynamic row-window load per ky, reused for all kx offsets.
        rows = x_ref[pl.ds(row0 + ky, row_span)]           # (row_span, Wp, Cin)
        for kx in range(kw):
            patch = rows[::stride, kx:kx + col_span:stride, :]   # (TH, Wout, Cin)
            patch = patch.reshape(R, Cin).astype(compute_dtype)
            wmat = w_ref[ky, kx].astype(compute_dtype)            # (Cin, Cpad)
            acc = acc + jnp.dot(patch, wmat,
                                preferred_element_type=jnp.float32)

    if with_bn_stats:
        y_ref[...] = acc.astype(y_ref.dtype)
        s = jnp.sum(acc, axis=0, keepdims=True)                   # (1, Cpad)
        sq = jnp.sum(acc * acc, axis=0, keepdims=True)            # (1, Cpad)
        stats_ref[...] = jnp.concatenate(
            [s, sq, jnp.zeros((6, Cpad), jnp.float32)], axis=0)
    else:
        acc = acc + bias_ref[...]
        if fuse_relu:
            acc = jnp.maximum(acc, 0.0)
        y_ref[...] = acc.astype(y_ref.dtype)


def _affine_relu_kernel(fuse_relu, y_ref, scale_ref, shift_ref, o_ref):
    """Per-channel scale/shift (+ReLU) epilogue: out = y*scale + shift."""
    out = y_ref[...] * scale_ref[...] + shift_ref[...]
    if fuse_relu:
        out = jnp.maximum(out, 0.0)
    o_ref[...] = out.astype(o_ref.dtype)


def basic_conv_forward(x, w, b, gamma, beta, *, stride=1, padding=0, relu=True,
                       bn=True, eps=1e-5, compute_dtype=jnp.float32,
                       row_tile_cap=1024):
    """Forward pass of `basic_conv` (Conv2d + train-mode BN + ReLU), NCHW I/O."""
    N, Cin, H, W = x.shape
    Cout, Cin_w, kh, kw = w.shape
    assert Cin_w == Cin  # TODO(synk): groups != 1 / dilation != 1 not implemented (CTPN uses defaults).

    Hout = (H + 2 * padding - kh) // stride + 1
    Wout = (W + 2 * padding - kw) // stride + 1
    Cpad = ((Cout + 127) // 128) * 128          # lane-dense output channels
    Hp, Wp = H + 2 * padding, W + 2 * padding

    # NHWC, spatially padded input (channels on the lane dim).
    xp = jnp.pad(x.transpose(0, 2, 3, 1),
                 ((0, 0), (padding, padding), (padding, padding), (0, 0)))
    # Weight (Cout,Cin,kh,kw) -> (kh,kw,Cin,Cpad) with zero-padded out-channels.
    wk_ = jnp.pad(w.transpose(2, 3, 1, 0),
                  ((0, 0), (0, 0), (0, 0), (0, Cpad - Cout)))

    # Row-tile size: largest divisor of Hout with TH*Wout <= row_tile_cap rows.
    target = max(1, row_tile_cap // max(Wout, 1))
    TH = 1
    for d in range(1, Hout + 1):
        if Hout % d == 0 and d <= target:
            TH = d
    T = Hout // TH
    R = TH * Wout

    cparams = pltpu.CompilerParams(
        dimension_semantics=("parallel", "parallel"),
        vmem_limit_bytes=48 * 1024 * 1024)

    x_spec = pl.BlockSpec((None, Hp, Wp, Cin), lambda n, t: (n, 0, 0, 0))
    w_spec = pl.BlockSpec((kh, kw, Cin, Cpad), lambda n, t: (0, 0, 0, 0))
    y_spec = pl.BlockSpec((None, R, Cpad), lambda n, t: (n * T + t, 0, 0))

    if bn:
        kern = functools.partial(_conv_kernel, TH, stride, kh, kw,
                                 compute_dtype, True, False)
        yconv, stats = pl.pallas_call(
            kern,
            grid=(N, T),
            in_specs=[x_spec, w_spec],
            out_specs=[y_spec,
                       pl.BlockSpec((None, 8, Cpad),
                                    lambda n, t: (n * T + t, 0, 0))],
            out_shape=[jax.ShapeDtypeStruct((N * T, R, Cpad), jnp.float32),
                       jax.ShapeDtypeStruct((N * T, 8, Cpad), jnp.float32)],
            compiler_params=cparams,
        )(xp, wk_)

        # Finish the batch moments across all tiles (tiny XLA reduction).
        Mtot = float(N * Hout * Wout)
        mean = jnp.sum(stats[:, 0, :], axis=0) / Mtot
        # E[x^2] - mean^2 in f32; adequate at these magnitudes (biased var,
        # matching torch BatchNorm2d normalization in train mode).
        var = jnp.sum(stats[:, 1, :], axis=0) / Mtot - mean * mean
        gpad = jnp.pad(gamma.astype(jnp.float32), (0, Cpad - Cout))
        bepad = jnp.pad(beta.astype(jnp.float32), (0, Cpad - Cout))
        scale = gpad * lax.rsqrt(var + eps)
        shift = bepad - mean * scale
        # Conv bias cancels exactly under train-mode BN -> skipped entirely.

        out = pl.pallas_call(
            functools.partial(_affine_relu_kernel, relu),
            grid=(N * T,),
            in_specs=[pl.BlockSpec((None, R, Cpad), lambda i: (i, 0, 0)),
                      pl.BlockSpec((1, Cpad), lambda i: (0, 0)),
                      pl.BlockSpec((1, Cpad), lambda i: (0, 0))],
            out_specs=pl.BlockSpec((None, R, Cpad), lambda i: (i, 0, 0)),
            out_shape=jax.ShapeDtypeStruct((N * T, R, Cpad), x.dtype),
            compiler_params=pltpu.CompilerParams(
                dimension_semantics=("parallel",),
                vmem_limit_bytes=48 * 1024 * 1024),
        )(yconv, scale.reshape(1, Cpad), shift.reshape(1, Cpad))
    else:
        bias = b if b is not None else jnp.zeros((Cout,), jnp.float32)
        bpad = jnp.pad(bias.astype(jnp.float32), (0, Cpad - Cout)).reshape(1, Cpad)
        kern = functools.partial(_conv_kernel, TH, stride, kh, kw,
                                 compute_dtype, False, relu)
        (out,) = pl.pallas_call(
            kern,
            grid=(N, T),
            in_specs=[x_spec, w_spec,
                      pl.BlockSpec((1, Cpad), lambda n, t: (0, 0))],
            out_specs=[y_spec],
            out_shape=[jax.ShapeDtypeStruct((N * T, R, Cpad), x.dtype)],
            compiler_params=cparams,
        )(xp, wk_, bpad)

    out = out.reshape(N, Hout, Wout, Cpad)[..., :Cout]
    # Returned as NCHW to match the PyTorch module; an NHWC end-to-end model
    # would skip this final transpose.
    return jnp.transpose(out, (0, 3, 1, 2))


def _reference(x, w, b, gamma, beta, *, stride, padding, relu, bn, eps=1e-5):
    """Pure-JAX reference (lax conv + manual train-mode BN + ReLU)."""
    y = lax.conv_general_dilated(
        x, w, window_strides=(stride, stride),
        padding=[(padding, padding), (padding, padding)],
        dimension_numbers=("NCHW", "OIHW", "NCHW"))
    y = y + b.reshape(1, -1, 1, 1)
    if bn:
        mean = jnp.mean(y, axis=(0, 2, 3), keepdims=True)
        var = jnp.mean((y - mean) ** 2, axis=(0, 2, 3), keepdims=True)
        y = (y - mean) * lax.rsqrt(var + eps) * gamma.reshape(1, -1, 1, 1) \
            + beta.reshape(1, -1, 1, 1)
    if relu:
        y = jnp.maximum(y, 0.0)
    return y


if __name__ == "__main__":
    # basic_conv(in_planes=4, out_planes=8, kernel_size=3, stride=1, padding=1)
    N, Cin, H, W = 2, 4, 16, 16
    Cout, kh, kw = 8, 3, 3
    stride, padding = 1, 1

    key = jax.random.PRNGKey(0)
    kx, kw_, kb, kg, kbe = jax.random.split(key, 5)
    x = jax.random.normal(kx, (N, Cin, H, W), dtype=jnp.float32)
    w = jax.random.normal(kw_, (Cout, Cin, kh, kw), dtype=jnp.float32) * 0.1
    b = jax.random.normal(kb, (Cout,), dtype=jnp.float32) * 0.1
    gamma = 1.0 + 0.1 * jax.random.normal(kg, (Cout,), dtype=jnp.float32)
    beta = 0.1 * jax.random.normal(kbe, (Cout,), dtype=jnp.float32)

    # 1) Conv + BN + ReLU (default basic_conv config), f32 MXU path.
    #    Small row_tile_cap forces multiple M-tiles -> exercises the cross-tile
    #    BN-statistics reduction.
    y = basic_conv_forward(x, w, b, gamma, beta, stride=stride, padding=padding,
                           relu=True, bn=True, row_tile_cap=64)
    y = jax.block_until_ready(y)
    y_ref = _reference(x, w, b, gamma, beta, stride=stride, padding=padding,
                       relu=True, bn=True)
    assert y.shape == (N, Cout, H, W)
    assert jnp.allclose(y, y_ref, atol=1e-4, rtol=1e-4), \
        f"bn path max abs err {jnp.max(jnp.abs(y - y_ref))}"

    # 2) Conv + bias + ReLU (bn=False, as used by CTPN's rpn conv): single
    #    fused kernel, no second pass.
    y2 = basic_conv_forward(x, w, b, gamma, beta, stride=stride,
                            padding=padding, relu=True, bn=False)
    y2 = jax.block_until_ready(y2)
    y2_ref = _reference(x, w, b, gamma, beta, stride=stride, padding=padding,
                        relu=True, bn=False)
    assert jnp.allclose(y2, y2_ref, atol=1e-4, rtol=1e-4), \
        f"no-bn path max abs err {jnp.max(jnp.abs(y2 - y2_ref))}"

    # 3) bf16 MXU operand path (recommended on v6e/v7x), f32 accumulation and
    #    f32 BN epilogue; looser tolerance vs the f32 reference.
    y3 = basic_conv_forward(x, w, b, gamma, beta, stride=stride,
                            padding=padding, relu=True, bn=True,
                            compute_dtype=jnp.bfloat16)
    y3 = jax.block_until_ready(y3)
    assert jnp.allclose(y3, y_ref, atol=5e-2, rtol=5e-2), \
        f"bf16 path max abs err {jnp.max(jnp.abs(y3 - y_ref))}"

    print("KERNEL_OK")
</pallas_src>

<mosaic_0001>
module attributes {stable_mosaic.version = 11 : i64} {
  func.func @_conv_kernel(%arg0: i32, %arg1: i32, %arg2: memref<1x18x18x4xf32, #tpu.memory_space<vmem>>, %arg3: memref<3x3x4x128xf32, #tpu.memory_space<vmem>>, %arg4: memref<1x64x128xf32, #tpu.memory_space<vmem>>, %arg5: memref<1x8x128xf32, #tpu.memory_space<vmem>>) attributes {dimension_semantics = [#tpu.dimension_semantics<parallel>, #tpu.dimension_semantics<parallel>], iteration_bounds = array<i64: 2, 4>, scalar_prefetch = 0 : i64, scratch_operands = 0 : i64, tpu.core_type = #tpu.core_type<tc>, window_params = [{transform_indices = @transform_0, window_bounds = array<i64: 1, 18, 18, 4>}, {pipeline_mode = #tpu.pipeline_mode<synchronous>, transform_indices = @transform_1, window_bounds = array<i64: 3, 3, 4, 128>}, {transform_indices = @transform_2, window_bounds = array<i64: 1, 64, 128>}, {transform_indices = @transform_3, window_bounds = array<i64: 1, 8, 128>}]} {
    %c4_i32 = arith.constant 4 : i32
    %0 = arith.muli %arg1, %c4_i32 : i32
    %cst = arith.constant 0.000000e+00 : f32
    %1 = vector.broadcast %cst : f32 to vector<64x128xf32>
    %c0_i32 = arith.constant 0 : i32
    %2 = arith.addi %0, %c0_i32 : i32
    %c0 = arith.constant 0 : index
    %3 = arith.index_cast %2 : i32 to index
    %c0_0 = arith.constant 0 : index
    %c0_1 = arith.constant 0 : index
    %4 = vector.load %arg2[%c0, %3, %c0_0, %c0_1] : memref<1x18x18x4xf32, #tpu.memory_space<vmem>>, vector<1x4x18x4xf32>
    %5 = vector.shape_cast %4 : vector<1x4x18x4xf32> to vector<4x18x4xf32>
    %6 = vector.extract_strided_slice %5 {offsets = [0, 0, 0], sizes = [4, 16, 4], strides = [1, 1, 1]} : vector<4x18x4xf32> to vector<4x16x4xf32>
    %7 = vector.shape_cast %6 : vector<4x16x4xf32> to vector<64x4xf32>
    %c0_2 = arith.constant 0 : index
    %c0_3 = arith.constant 0 : index
    %c0_4 = arith.constant 0 : index
    %c0_5 = arith.constant 0 : index
    %8 = vector.load %arg3[%c0_2, %c0_3, %c0_4, %c0_5] : memref<3x3x4x128xf32, #tpu.memory_space<vmem>>, vector<1x1x4x128xf32>
    %9 = vector.shape_cast %8 : vector<1x1x4x128xf32> to vector<4x128xf32>
    %cst_6 = arith.constant dense<0.000000e+00> : vector<64x128xf32>
    %10 = tpu.matmul %7, %9, %cst_6 {dimension_numbers = #tpu.dot_dimension_numbers<[1], [0], [0], [1], [0, 0, 1, 1], [], []>} : vector<64x4xf32>, vector<4x128xf32>, vector<64x128xf32> -> vector<64x128xf32>
    %11 = arith.addf %1, %10 : vector<64x128xf32>
    %12 = vector.extract_strided_slice %5 {offsets = [0, 1, 0], sizes = [4, 16, 4], strides = [1, 1, 1]} : vector<4x18x4xf32> to vector<4x16x4xf32>
    %13 = vector.shape_cast %12 : vector<4x16x4xf32> to vector<64x4xf32>
    %c0_7 = arith.constant 0 : index
    %c1 = arith.constant 1 : index
    %c0_8 = arith.constant 0 : index
    %c0_9 = arith.constant 0 : index
    %14 = vector.load %arg3[%c0_7, %c1, %c0_8, %c0_9] : memref<3x3x4x128xf32, #tpu.memory_space<vmem>>, vector<1x1x4x128xf32>
    %15 = vector.shape_cast %14 : vector<1x1x4x128xf32> to vector<4x128xf32>
    %cst_10 = arith.constant dense<0.000000e+00> : vector<64x128xf32>
    %16 = tpu.matmul %13, %15, %cst_10 {dimension_numbers = #tpu.dot_dimension_numbers<[1], [0], [0], [1], [0, 0, 1, 1], [], []>} : vector<64x4xf32>, vector<4x128xf32>, vector<64x128xf32> -> vector<64x128xf32>
    %17 = arith.addf %11, %16 : vector<64x128xf32>
    %18 = vector.extract_strided_slice %5 {offsets = [0, 2, 0], sizes = [4, 16, 4], strides = [1, 1, 1]} : vector<4x18x4xf32> to vector<4x16x4xf32>
    %19 = vector.shape_cast %18 : vector<4x16x4xf32> to vector<64x4xf32>
    %c0_11 = arith.constant 0 : index
    %c2 = arith.constant 2 : index
    %c0_12 = arith.constant 0 : index
    %c0_13 = arith.constant 0 : index
    %20 = vector.load %arg3[%c0_11, %c2, %c0_12, %c0_13] : memref<3x3x4x128xf32, #tpu.memory_space<vmem>>, vector<1x1x4x128xf32>
    %21 = vector.shape_cast %20 : vector<1x1x4x128xf32> to vector<4x128xf32>
    %cst_14 = arith.constant dense<0.000000e+00> : vector<64x128xf32>
    %22 = tpu.matmul %19, %21, %cst_14 {dimension_numbers = #tpu.dot_dimension_numbers<[1], [0], [0], [1], [0, 0, 1, 1], [], []>} : vector<64x4xf32>, vector<4x128xf32>, vector<64x128xf32> -> vector<64x128xf32>
    %23 = arith.addf %17, %22 : vector<64x128xf32>
    %c1_i32 = arith.constant 1 : i32
    %24 = arith.addi %0, %c1_i32 : i32
    %c0_15 = arith.constant 0 : index
    %25 = arith.index_cast %24 : i32 to index
    %c0_16 = arith.constant 0 : index
    %c0_17 = arith.constant 0 : index
    %26 = vector.load %arg2[%c0_15, %25, %c0_16, %c0_17] : memref<1x18x18x4xf32, #tpu.memory_space<vmem>>, vector<1x4x18x4xf32>
    %27 = vector.shape_cast %26 : vector<1x4x18x4xf32> to vector<4x18x4xf32>
    %28 = vector.extract_strided_slice %27 {offsets = [0, 0, 0], sizes = [4, 16, 4], strides = [1, 1, 1]} : vector<4x18x4xf32> to vector<4x16x4xf32>
    %29 = vector.shape_cast %28 : vector<4x16x4xf32> to vector<64x4xf32>
    %c1_18 = arith.constant 1 : index
    %c0_19 = arith.constant 0 : index
    %c0_20 = arith.constant 0 : index
    %c0_21 = arith.constant 0 : index
    %30 = vector.load %arg3[%c1_18, %c0_19, %c0_20, %c0_21] : memref<3x3x4x128xf32, #tpu.memory_space<vmem>>, vector<1x1x4x128xf32>
    %31 = vector.shape_cast %30 : vector<1x1x4x128xf32> to vector<4x128xf32>
    %cst_22 = arith.constant dense<0.000000e+00> : vector<64x128xf32>
    %32 = tpu.matmul %29, %31, %cst_22 {dimension_numbers = #tpu.dot_dimension_numbers<[1], [0], [0], [1], [0, 0, 1, 1], [], []>} : vector<64x4xf32>, vector<4x128xf32>, vector<64x128xf32> -> vector<64x128xf32>
    %33 = arith.addf %23, %32 : vector<64x128xf32>
    %34 = vector.extract_strided_slice %27 {offsets = [0, 1, 0], sizes = [4, 16, 4], strides = [1, 1, 1]} : vector<4x18x4xf32> to vector<4x16x4xf32>
    %35 = vector.shape_cast %34 : vector<4x16x4xf32> to vector<64x4xf32>
    %c1_23 = arith.constant 1 : index
    %c1_24 = arith.constant 1 : index
    %c0_25 = arith.constant 0 : index
    %c0_26 = arith.constant 0 : index
    %36 = vector.load %arg3[%c1_23, %c1_24, %c0_25, %c0_26] : memref<3x3x4x128xf32, #tpu.memory_space<vmem>>, vector<1x1x4x128xf32>
    %37 = vector.shape_cast %36 : vector<1x1x4x128xf32> to vector<4x128xf32>
    %cst_27 = arith.constant dense<0.000000e+00> : vector<64x128xf32>
    %38 = tpu.matmul %35, %37, %cst_27 {dimension_numbers = #tpu.dot_dimension_numbers<[1], [0], [0], [1], [0, 0, 1, 1], [], []>} : vector<64x4xf32>, vector<4x128xf32>, vector<64x128xf32> -> vector<64x128xf32>
    %39 = arith.addf %33, %38 : vector<64x128xf32>
    %40 = vector.extract_strided_slice %27 {offsets = [0, 2, 0], sizes = [4, 16, 4], strides = [1, 1, 1]} : vector<4x18x4xf32> to vector<4x16x4xf32>
    %41 = vector.shape_cast %40 : vector<4x16x4xf32> to vector<64x4xf32>
    %c1_28 = arith.constant 1 : index
    %c2_29 = arith.constant 2 : index
    %c0_30 = arith.constant 0 : index
    %c0_31 = arith.constant 0 : index
    %42 = vector.load %arg3[%c1_28, %c2_29, %c0_30, %c0_31] : memref<3x3x4x128xf32, #tpu.memory_space<vmem>>, vector<1x1x4x128xf32>
    %43 = vector.shape_cast %42 : vector<1x1x4x128xf32> to vector<4x128xf32>
    %cst_32 = arith.constant dense<0.000000e+00> : vector<64x128xf32>
    %44 = tpu.matmul %41, %43, %cst_32 {dimension_numbers = #tpu.dot_dimension_numbers<[1], [0], [0], [1], [0, 0, 1, 1], [], []>} : vector<64x4xf32>, vector<4x128xf32>, vector<64x128xf32> -> vector<64x128xf32>
    %45 = arith.addf %39, %44 : vector<64x128xf32>
    %c2_i32 = arith.constant 2 : i32
    %46 = arith.addi %0, %c2_i32 : i32
    %c0_33 = arith.constant 0 : index
    %47 = arith.index_cast %46 : i32 to index
    %c0_34 = arith.constant 0 : index
    %c0_35 = arith.constant 0 : index
    %48 = vector.load %arg2[%c0_33, %47, %c0_34, %c0_35] : memref<1x18x18x4xf32, #tpu.memory_space<vmem>>, vector<1x4x18x4xf32>
    %49 = vector.shape_cast %48 : vector<1x4x18x4xf32> to vector<4x18x4xf32>
    %50 = vector.extract_strided_slice %49 {offsets = [0, 0, 0], sizes = [4, 16, 4], strides = [1, 1, 1]} : vector<4x18x4xf32> to vector<4x16x4xf32>
    %51 = vector.shape_cast %50 : vector<4x16x4xf32> to vector<64x4xf32>
    %c2_36 = arith.constant 2 : index
    %c0_37 = arith.constant 0 : index
    %c0_38 = arith.constant 0 : index
    %c0_39 = arith.constant 0 : index
    %52 = vector.load %arg3[%c2_36, %c0_37, %c0_38, %c0_39] : memref<3x3x4x128xf32, #tpu.memory_space<vmem>>, vector<1x1x4x128xf32>
    %53 = vector.shape_cast %52 : vector<1x1x4x128xf32> to vector<4x128xf32>
    %cst_40 = arith.constant dense<0.000000e+00> : vector<64x128xf32>
    %54 = tpu.matmul %51, %53, %cst_40 {dimension_numbers = #tpu.dot_dimension_numbers<[1], [0], [0], [1], [0, 0, 1, 1], [], []>} : vector<64x4xf32>, vector<4x128xf32>, vector<64x128xf32> -> vector<64x128xf32>
    %55 = arith.addf %45, %54 : vector<64x128xf32>
    %56 = vector.extract_strided_slice %49 {offsets = [0, 1, 0], sizes = [4, 16, 4], strides = [1, 1, 1]} : vector<4x18x4xf32> to vector<4x16x4xf32>
    %57 = vector.shape_cast %56 : vector<4x16x4xf32> to vector<64x4xf32>
    %c2_41 = arith.constant 2 : index
    %c1_42 = arith.constant 1 : index
    %c0_43 = arith.constant 0 : index
    %c0_44 = arith.constant 0 : index
    %58 = vector.load %arg3[%c2_41, %c1_42, %c0_43, %c0_44] : memref<3x3x4x128xf32, #tpu.memory_space<vmem>>, vector<1x1x4x128xf32>
    %59 = vector.shape_cast %58 : vector<1x1x4x128xf32> to vector<4x128xf32>
    %cst_45 = arith.constant dense<0.000000e+00> : vector<64x128xf32>
    %60 = tpu.matmul %57, %59, %cst_45 {dimension_numbers = #tpu.dot_dimension_numbers<[1], [0], [0], [1], [0, 0, 1, 1], [], []>} : vector<64x4xf32>, vector<4x128xf32>, vector<64x128xf32> -> vector<64x128xf32>
    %61 = arith.addf %55, %60 : vector<64x128xf32>
    %62 = vector.extract_strided_slice %49 {offsets = [0, 2, 0], sizes = [4, 16, 4], strides = [1, 1, 1]} : vector<4x18x4xf32> to vector<4x16x4xf32>
    %63 = vector.shape_cast %62 : vector<4x16x4xf32> to vector<64x4xf32>
    %c2_46 = arith.constant 2 : index
    %c2_47 = arith.constant 2 : index
    %c0_48 = arith.constant 0 : index
    %c0_49 = arith.constant 0 : index
    %64 = vector.load %arg3[%c2_46, %c2_47, %c0_48, %c0_49] : memref<3x3x4x128xf32, #tpu.memory_space<vmem>>, vector<1x1x4x128xf32>
    %65 = vector.shape_cast %64 : vector<1x1x4x128xf32> to vector<4x128xf32>
    %cst_50 = arith.constant dense<0.000000e+00> : vector<64x128xf32>
    %66 = tpu.matmul %63, %65, %cst_50 {dimension_numbers = #tpu.dot_dimension_numbers<[1], [0], [0], [1], [0, 0, 1, 1], [], []>} : vector<64x4xf32>, vector<4x128xf32>, vector<64x128xf32> -> vector<64x128xf32>
    %67 = arith.addf %61, %66 : vector<64x128xf32>
    %c0_51 = arith.constant 0 : index
    %c0_52 = arith.constant 0 : index
    %c0_53 = arith.constant 0 : index
    %68 = vector.load %arg4[%c0_51, %c0_52, %c0_53] : memref<1x64x128xf32, #tpu.memory_space<vmem>>, vector<1x64x128xf32>
    %69 = vector.shape_cast %68 : vector<1x64x128xf32> to vector<64x128xf32>
    %70 = vector.shape_cast %67 : vector<64x128xf32> to vector<1x64x128xf32>
    tpu.vector_store %arg4[%c0_51, %c0_52, %c0_53], %70 {strides = array<i32>} : memref<1x64x128xf32, #tpu.memory_space<vmem>>, vector<1x64x128xf32>,
    %cst_54 = arith.constant dense<0.000000e+00> : vector<128xf32>
    %71 = vector.multi_reduction <add>, %67, %cst_54 [0] : vector<64x128xf32> to vector<128xf32>
    %72 = vector.shape_cast %71 : vector<128xf32> to vector<1x128xf32>
    %73 = arith.mulf %67, %67 : vector<64x128xf32>
    %cst_55 = arith.constant dense<0.000000e+00> : vector<128xf32>
    %74 = vector.multi_reduction <add>, %73, %cst_55 [0] : vector<64x128xf32> to vector<128xf32>
    %75 = vector.shape_cast %74 : vector<128xf32> to vector<1x128xf32>
    %cst_56 = arith.constant 0.000000e+00 : f32
    %76 = vector.broadcast %cst_56 : f32 to vector<6x128xf32>
    %77 = tpu.concatenate %72, %75, %76 in 0 : vector<1x128xf32>, vector<1x128xf32>, vector<6x128xf32> -> vector<8x128xf32>
    %c0_57 = arith.constant 0 : index
    %c0_58 = arith.constant 0 : index
    %c0_59 = arith.constant 0 : index
    %78 = vector.load %arg5[%c0_57, %c0_58, %c0_59] : memref<1x8x128xf32, #tpu.memory_space<vmem>>, vector<1x8x128xf32>
    %79 = vector.shape_cast %78 : vector<1x8x128xf32> to vector<8x128xf32>
    %80 = vector.shape_cast %77 : vector<8x128xf32> to vector<1x8x128xf32>
    tpu.vector_store %arg5[%c0_57, %c0_58, %c0_59], %80 {strides = array<i32>} : memref<1x8x128xf32, #tpu.memory_space<vmem>>, vector<1x8x128xf32>,
    return
  }
  func.func @transform_0(%arg0: i32, %arg1: i32) -> (i32, i32, i32, i32) {
    %c0_i32 = arith.constant 0 : i32
    %c0_i32_0 = arith.constant 0 : i32
    %c0_i32_1 = arith.constant 0 : i32
    %c0_i32_2 = arith.constant 0 : i32
    return %arg0, %c0_i32, %c0_i32_0, %c0_i32_1 : i32, i32, i32, i32
  }
  func.func @transform_1(%arg0: i32, %arg1: i32) -> (i32, i32, i32, i32) {
    %c0_i32 = arith.constant 0 : i32
    %c0_i32_0 = arith.constant 0 : i32
    %c0_i32_1 = arith.constant 0 : i32
    %c0_i32_2 = arith.constant 0 : i32
    %c0_i32_3 = arith.constant 0 : i32
    return %c0_i32, %c0_i32_0, %c0_i32_1, %c0_i32_2 : i32, i32, i32, i32
  }
  func.func @transform_2(%arg0: i32, %arg1: i32) -> (i32, i32, i32) {
    %c4_i32 = arith.constant 4 : i32
    %0 = arith.muli %arg0, %c4_i32 : i32
    %1 = arith.addi %0, %arg1 : i32
    %c0_i32 = arith.constant 0 : i32
    %c0_i32_0 = arith.constant 0 : i32
    %c0_i32_1 = arith.constant 0 : i32
    return %1, %c0_i32, %c0_i32_0 : i32, i32, i32
  }
  func.func @transform_3(%arg0: i32, %arg1: i32) -> (i32, i32, i32) {
    %c4_i32 = arith.constant 4 : i32
    %0 = arith.muli %arg0, %c4_i32 : i32
    %1 = arith.addi %0, %arg1 : i32
    %c0_i32 = arith.constant 0 : i32
    %c0_i32_0 = arith.constant 0 : i32
    %c0_i32_1 = arith.constant 0 : i32
    return %1, %c0_i32, %c0_i32_0 : i32, i32, i32
  }
}

</mosaic_0001>

<llo_original>
// kernel: tpu_custom_call.1
$region0: #{tpu_custom_call.1}
  #allocation0 [shape = 'u32[]', space=smem, size = 0x4, offset = 0x4, fixed_abs, tag = 'smem constant byte address 0x4 - core index']
  #allocation1 [shape = 'u32[144,128]{1,0:T(1,128)}', space=vmem, size = 0x12000, scoped, tag = 'internal scratch']
  %s0 = inlined_call_operand.vmem [shape: f32[2,18,18,4], index: 0, kind: input, shape index: {}]
  %s1 = inlined_call_operand.vmem [shape: f32[3,3,4,128], index: 1, kind: input, shape index: {}]
  %s2 = inlined_call_operand.hbm [shape: f32[8,64,128], index: 2, kind: output, shape index: {0}]
  %s3 = inlined_call_operand.hbm [shape: f32[8,8,128], index: 3, kind: output, shape index: {1}]
  %4 = xla_tuple %s2, %s3
  %s5 = sld [smem:[#allocation0]]
  $region49: #{tpu_custom_call.1} parent=0
    _
  %s7 = ssub.s32 1, %s5
  %s8 = scalar_select 0, %s7, %s5
  $region1: #{tpu_custom_call.1} parent=0
    #allocation2 [shape = 'u8[65536]{0}', space=vmem, size = 0x10000, scoped, tag = 'output window, operand 0']
    #allocation3 [shape = 's32[2]{0}', space=sflag, size = 0x8, scoped, tag = 'scoped memory for tpu_custom_call.1']
    #allocation4 [shape = 'u8[8192]{0}', space=vmem, size = 0x2000, scoped, tag = 'output window, operand 1']
    #allocation5 [shape = 's32[2]{0}', space=sflag, size = 0x8, scoped, tag = 'scoped memory for tpu_custom_call.1']
    %9 = vsyncpa [#allocation3], 0
    %s10 = scalar_lea.sflag [#allocation3], 1
    %11 = vsyncpa %s10, 0
    %12 = vsyncpa [#allocation5], 0
    %s13 = scalar_lea.sflag [#allocation5], 1
    %14 = vsyncpa %s13, 0
    loop: start=0, step=1, limit=10
    $region2: #{tpu_custom_call.1} parent=1 // loop_pre_header
      _
    $region3: #{tpu_custom_call.1} parent=1 // loop_header
      %s16 = sphi 0, %s20
      %p17 = scmp.ge.s32.totalorder %s16, 10
      %s23 = sphi 0, %s35
      %s24 = sphi 0, %s31
      %s25 = sphi 0, %s23
      %s26 = sphi 0, %s24
      %s27 = sphi 0, %s25
      %s28 = sphi 0, %s26
      %s38 = sphi 0, %s40
      %s41 = sphi 0, %s38
      %s42 = sphi 0, %s41
      %s58 = sphi 0, %s42
      %s62 = sphi 0, %s62
      %s64 = sphi 0, %s62
      %s65 = sphi 0, %s64
      %s79 = sphi 0, %s65
      %s89 = sphi 0, %s91
      %s92 = sphi 0, %s89
      %s93 = sphi 0, %s92
      %s109 = sphi 0, %s93
      %s119 = sphi 0, %s121
      %s122 = sphi 0, %s119
      %s123 = sphi 0, %s122
      %s139 = sphi 0, %s123
    $region4: #{tpu_custom_call.1} parent=1 // loop_header_branch
      %19 = sbr.rel (%p17) target = $region8
    $region5: #{tpu_custom_call.1} parent=1 // loop_body
      %s21 = ssub.s32 %s16, 1
      %s22 = ssub.s32 %s16, 2
      %s29 = sadd.s32 1, %s24
      %p30 = scmp.ge.s32.totalorder %s29, 4
      %s31 = scalar_select %p30, 0, %s29
      %s32 = sadd.s32 1, %s23
      %s33 = scalar_select %p30, %s32, %s23
      %p34 = scmp.ge.s32.totalorder %s33, 2
      %s35 = scalar_select %p34, 0, %s33
      %s36 = ssub.s32 %s23, %s35
      %p37 = scmp.eq.s32.totalorder %s36, 0
      %s39 = sadd.s32 %s38, 1
      %s40 = scalar_select %p37, %s38, %s39
      %p43 = pneg %p37
      %p44 = scmp.eq.s32.totalorder %s16, 7
      %p45 = por %p43, %p44
      %p46 = scmp.ne.s32.totalorder %s38, %s41
      %p47 = scmp.eq.s32.totalorder %s16, 0
      %p48 = por %p46, %p47
      %p49 = scmp.ne.s32.totalorder %s38, %s41
      %p50 = scmp.eq.s32.totalorder %s21, 7
      %p51 = por %p49, %p50
      %p52 = scmp.ne.s32.totalorder %s41, %s42
      %p53 = scmp.eq.s32.totalorder %s21, 0
      %p54 = por %p52, %p53
      %p55 = scmp.ne.s32.totalorder %s41, %s42
      %p56 = scmp.eq.s32.totalorder %s22, 7
      %p57 = por %p55, %p56
      %p59 = scmp.ne.s32.totalorder %s42, %s58
      %p60 = scmp.eq.s32.totalorder %s22, 0
      %p61 = por %p59, %p60
      %s63 = sadd.s32 %s62, 1
      %p66 = scmp.eq.s32.totalorder %s16, 7
      %p67 = scmp.ne.s32.totalorder %s62, %s64
      %p68 = scmp.eq.s32.totalorder %s16, 0
      %p69 = por %p67, %p68
      %p70 = scmp.ne.s32.totalorder %s62, %s64
      %p71 = scmp.eq.s32.totalorder %s21, 7
      %p72 = por %p70, %p71
      %p73 = scmp.ne.s32.totalorder %s64, %s65
      %p74 = scmp.eq.s32.totalorder %s21, 0
      %p75 = por %p73, %p74
      %p76 = scmp.ne.s32.totalorder %s64, %s65
      %p77 = scmp.eq.s32.totalorder %s22, 7
      %p78 = por %p76, %p77
      %p80 = scmp.ne.s32.totalorder %s65, %s79
      %p81 = scmp.eq.s32.totalorder %s22, 0
      %p82 = por %p80, %p81
      %s83 = smul.u32 %s23, 4
      %s84 = sadd.s32 %s83, %s24
      %s85 = smul.u32 %s35, 4
      %s86 = sadd.s32 %s85, %s31
      %s87 = ssub.s32 %s84, %s86
      %p88 = scmp.eq.s32.totalorder %s87, 0
      %s90 = sadd.s32 %s89, 1
      %s91 = scalar_select %p88, %s89, %s90
      %p94 = pneg %p88
      %p95 = scmp.eq.s32.totalorder %s16, 7
      %p96 = por %p94, %p95
      %p97 = scmp.ne.s32.totalorder %s89, %s92
      %p98 = scmp.eq.s32.totalorder %s16, 0
      %p99 = por %p97, %p98
      %p100 = scmp.ne.s32.totalorder %s89, %s92
      %p101 = scmp.eq.s32.totalorder %s21, 7
      %p102 = por %p100, %p101
      %p103 = scmp.ne.s32.totalorder %s92, %s93
      %p104 = scmp.eq.s32.totalorder %s21, 0
      %p105 = por %p103, %p104
      %p106 = scmp.ne.s32.totalorder %s92, %s93
      %p107 = scmp.eq.s32.totalorder %s22, 7
      %p108 = por %p106, %p107
      %p110 = scmp.ne.s32.totalorder %s93, %s109
      %p111 = scmp.eq.s32.totalorder %s22, 0
      %p112 = por %p110, %p111
      %s113 = smul.u32 %s23, 4
      %s114 = sadd.s32 %s113, %s24
      %s115 = smul.u32 %s35, 4
      %s116 = sadd.s32 %s115, %s31
      %s117 = ssub.s32 %s114, %s116
      %p118 = scmp.eq.s32.totalorder %s117, 0
      %s120 = sadd.s32 %s119, 1
      %s121 = scalar_select %p118, %s119, %s120
      %p124 = pneg %p118
      %p125 = scmp.eq.s32.totalorder %s16, 7
      %p126 = por %p124, %p125
      %p127 = scmp.ne.s32.totalorder %s119, %s122
      %p128 = scmp.eq.s32.totalorder %s16, 0
      %p129 = por %p127, %p128
      %p130 = scmp.ne.s32.totalorder %s119, %s122
      %p131 = scmp.eq.s32.totalorder %s21, 7
      %p132 = por %p130, %p131
      %p133 = scmp.ne.s32.totalorder %s122, %s123
      %p134 = scmp.eq.s32.totalorder %s21, 0
      %p135 = por %p133, %p134
      %p136 = scmp.ne.s32.totalorder %s122, %s123
      %p137 = scmp.eq.s32.totalorder %s22, 7
      %p138 = por %p136, %p137
      %p140 = scmp.ne.s32.totalorder %s123, %s139
      %p141 = scmp.eq.s32.totalorder %s22, 0
      %p142 = por %p140, %p141
      %p143 = scmp.le.s32.totalorder 1, %s16
      %p144 = scmp.lt.s32.totalorder %s16, 9
      %p145 = pnand %p143, %p144
      %p146 = pneg %p145
      // Predicated region
      $region9: #{tpu_custom_call.1} parent=5 // pred_check
        _
      $region10: #{tpu_custom_call.1} parent=5 // pred_check_branch
        %148 = sbr.rel (%p145) target = $region12
      $region11: #{tpu_custom_call.1} parent=5 // pred_region
        %s149 = ssub.s32 %s16, 1
        // Predicated region
        $region13: #{tpu_custom_call.1} parent=11 // pred_check
          %p150 = pneg %p75
        $region14: #{tpu_custom_call.1} parent=11 // pred_check_branch
          %152 = sbr.rel (%p150) target = $region16
        $region15: #{tpu_custom_call.1} parent=11 // pred_region
          _
        $region16: #{tpu_custom_call.1} parent=11 // pred_fallthru
          _
      $region12: #{tpu_custom_call.1} parent=5 // pred_fallthru
        _
      %p153 = scmp.lt.s32.totalorder %s16, 8
      // Predicated region
      $region17: #{tpu_custom_call.1} parent=5 // pred_check
        %p154 = pneg %p153
      $region18: #{tpu_custom_call.1} parent=5 // pred_check_branch
        %156 = sbr.rel (%p154) target = $region20
      $region19: #{tpu_custom_call.1} parent=5 // pred_region
        // Predicated region
        $region21: #{tpu_custom_call.1} parent=19 // pred_check
          %p157 = pneg %p48
        $region22: #{tpu_custom_call.1} parent=19 // pred_check_branch
          %159 = sbr.rel (%p157) target = $region24
        $region23: #{tpu_custom_call.1} parent=19 // pred_region
          %p160 = scmp.lt.s32.totalorder %s23, 1
          %s161 = scalar_select %p160, %s23, 1
          %s162 = smul.addr %s161, 54
          %s163 = smul.addr %s162, 8
          %s164 = scalar_lea.vmem %s0, %s163
        $region24: #{tpu_custom_call.1} parent=19 // pred_fallthru
          _
      $region20: #{tpu_custom_call.1} parent=5 // pred_fallthru
        _
      %p165 = scmp.le.s32.totalorder 1, %s16
      %p166 = scmp.lt.s32.totalorder %s16, 9
      %p167 = pnand %p165, %p166
      %p168 = pneg %p167
      // Predicated region
      $region25: #{tpu_custom_call.1} parent=5 // pred_check
        _
      $region26: #{tpu_custom_call.1} parent=5 // pred_check_branch
        %170 = sbr.rel (%p167) target = $region28
      $region27: #{tpu_custom_call.1} parent=5 // pred_region
        %s171 = ssub.s32 %s16, 1
        %p172 = scmp.lt.s32.totalorder %s25, 1
        %s173 = scalar_select %p172, %s25, 1
        %s174 = smul.addr %s173, 54
        %s175 = smul.addr %s174, 8
        %s176 = scalar_lea.vmem %s0, %s175
        %p177 = pneg %p54
        %p178 = pneg %p51
        %p179 = pneg %p75
        %p180 = pneg %p72
        %p181 = pneg %p105
        %p182 = pneg %p102
        %s183 = sand.u32 %s92, 1
        %s184 = scalar_lea.sflag [#allocation3], %s183
        %s185 = sand.u32 %s92, 1
        %s186 = smul.addr %s185, 64
        %s187 = scalar_lea.vmem [#allocation2], %s186
        %p188 = pneg %p135
        %p189 = pneg %p132
        %s190 = sand.u32 %s122, 1
        %s191 = scalar_lea.sflag [#allocation5], %s190
        %s192 = sand.u32 %s122, 1
        %s193 = smul.addr %s192, 8
        %s194 = scalar_lea.vmem [#allocation4], %s193
        %p195 = scmp.lt.s32.totalorder %s25, 1
        %s196 = scalar_select %p195, %s25, 1
        %s197 = smul.addr %s196, 54
        %s198 = smul.addr %s197, 8
        %s199 = scalar_lea.vmem %s0, %s198
        %s200 = smul.u32 %s25, 4
        %s201 = sadd.s32 %s200, %s26
        %s202 = smul.u32 %s25, 4
        %s203 = sadd.s32 %s202, %s26
        %s204 = smul.u32 %s26, 4
        %s205 = smul.u32 %s204, 24
        %s206 = scalar_lea.vmem %s199, %s205
        %v207 = vld [vmem:[%s206] sm:$0xff]
        %v208 = vld [vmem:[%s206 + $0x8] sm:$0xff]
        %v209 = vld [vmem:[%s206 + $0x10] sm:$0x3]
        %v210 = vld [vmem:[%s206 + $0x18] sm:$0xff]
        %v211 = vld [vmem:[%s206 + $0x20] sm:$0xff]
        %v212 = vld [vmem:[%s206 + $0x28] sm:$0x3]
        %v213 = vld [vmem:[%s206 + $0x30] sm:$0xff]
        %v214 = vld [vmem:[%s206 + $0x38] sm:$0xff]
        %v215 = vld [vmem:[%s206 + $0x40] sm:$0x3]
        %v216 = vld [vmem:[%s206 + $0x48] sm:$0xff]
        %v217 = vld [vmem:[%s206 + $0x50] sm:$0xff]
        %v218 = vld [vmem:[%s206 + $0x58] sm:$0x3]
        %v219 = vld [vmem:[%s1] sm:$0xf]
        %vm232 = vcmask 1046528
        %v233 = vrot.slane %v207, 1
        %v234 = vrot.slane %v208, 1
        %v235 = vsel %vm232, %v233, %v234
        %v236 = vrot.slane %v209, 1
        %v237 = vsel %vm232, %v234, %v236
        %v238 = vrot.slane %v210, 1
        %v239 = vrot.slane %v211, 1
        %v240 = vsel %vm232, %v238, %v239
        %v241 = vrot.slane %v212, 1
        %v242 = vsel %vm232, %v239, %v241
        %v243 = vrot.slane %v213, 1
        %v244 = vrot.slane %v214, 1
        %v245 = vsel %vm232, %v243, %v244
        %v246 = vrot.slane %v215, 1
        %v247 = vsel %vm232, %v244, %v246
        %v248 = vrot.slane %v216, 1
        %v249 = vrot.slane %v217, 1
        %v250 = vsel %vm232, %v248, %v249
        %v251 = vrot.slane %v218, 1
        %v252 = vsel %vm232, %v249, %v251
        %s253 = scalar_lea.vmem %s1, 4
        %v254 = vld [vmem:[%s253] sm:$0xf]
        %vm255 = vcmask 31744
        %v256 = vsel %vm255, %v235, 0
        %v258 = vsel %vm255, %v237, 0
        %v260 = vsel %vm255, %v240, 0
        %v262 = vsel %vm255, %v242, 0
        %v264 = vsel %vm255, %v245, 0
        %v266 = vsel %vm255, %v247, 0
        %v268 = vsel %vm255, %v250, 0
        %v270 = vsel %vm255, %v252, 0
        %vm272 = vcmask 1043456
        %v274 = vsel %vm272, %v254, 0
        %276 = vmatprep.subr.mxu0 0.0
        %277 = vmatpush1.msra.mxu0 %v274
        %278 = vmatprep.subr.mxu0 0.0
        %279 = vmatpush1.msra.mxu0 0.0
        %280 = vmatprep.subr.mxu0 0.0
        %281 = vmatpush1.msra.mxu0 0.0
        %282 = vmatprep.subr.mxu0 0.0
        %283 = vmatpush1.msra.mxu0 0.0
        %284 = vmatprep.subr.mxu0 0.0
        %285 = vmatpush1.msra.mxu0 0.0
        %286 = vmatprep.subr.mxu0 0.0
        %287 = vmatpush1.msra.mxu0 0.0
        %288 = vmatprep.subr.mxu0 0.0
        %289 = vmatpush1.msra.mxu0 0.0
        %290 = vmatprep.subr.mxu0 0.0
        %291 = vmatpush1.msra.mxu0 0.0
        %292 = vmatprep.subr.mxu0 0.0
        %293 = vmatpush1.msra.mxu0 0.0
        %294 = vmatprep.subr.mxu0 0.0
        %295 = vmatpush1.msra.mxu0 0.0
        %296 = vmatprep.subr.mxu0 0.0
        %297 = vmatpush1.msra.mxu0 0.0
        %298 = vmatprep.subr.mxu0 0.0
        %299 = vmatpush1.msra.mxu0 0.0
        %300 = vmatprep.subr.mxu0 0.0
        %301 = vmatpush1.msra.mxu0 0.0
        %302 = vmatprep.subr.mxu0 0.0
        %303 = vmatpush1.msra.mxu0 0.0
        %304 = vmatprep.subr.mxu0 0.0
        %305 = vmatpush1.msra.mxu0 0.0
        %306 = vmatprep.subr.mxu0 0.0
        %307 = vmatpush1.msra.mxu0 0.0
        %308 = vmatprep.subr.mxu0 0.0
        %309 = vmatpush1.msra.mxu0 0.0
        %310 = vmatprep.subr.mxu0 0.0
        %311 = vmatpush1.msra.mxu0 0.0
        %312 = vmatprep.subr.mxu0 0.0
        %313 = vmatpush1.msra.mxu0 0.0
        %314 = vmatprep.subr.mxu0 0.0
        %315 = vmatpush1.msra.mxu0 0.0
        %316 = vmatprep.subr.mxu0 0.0
        %317 = vmatpush1.msra.mxu0 0.0
        %318 = vmatprep.subr.mxu0 0.0
        %319 = vmatpush1.msra.mxu0 0.0
        %320 = vmatprep.subr.mxu0 0.0
        %321 = vmatpush1.msra.mxu0 0.0
        %322 = vmatprep.subr.mxu0 0.0
        %323 = vmatpush1.msra.mxu0 0.0
        %324 = vmatprep.subr.mxu0 0.0
        %325 = vmatpush1.msra.mxu0 0.0
        %326 = vmatprep.subr.mxu0 0.0
        %327 = vmatpush1.msra.mxu0 0.0
        %328 = vmatprep.subr.mxu0 0.0
        %329 = vmatpush1.msra.mxu0 0.0
        %330 = vmatprep.subr.mxu0 0.0
        %331 = vmatpush1.msra.mxu0 0.0
        %332 = vmatprep.subr.mxu0 0.0
        %333 = vmatpush1.msra.mxu0 0.0
        %334 = vmatprep.subr.mxu0 0.0
        %335 = vmatpush1.msra.mxu0 0.0
        %336 = vmatprep.subr.mxu0 0.0
        %337 = vmatpush1.msra.mxu0 0.0
        %338 = vmatprep.subr.mxu0 0.0
        %339 = vmatpush1.msra.mxu0 0.0
        %340 = vmatprep.mubr.f32.mxu0 0.0
        %341 = vmatmul.mubr.f32.gmra.mrb[0].mxu0 %v256
        %v342 = vpop.f32.mrb[0].mxu0
        %v343 = vadd.f32 0.0, %v342
        %v344 = vpop.f32.mrb[0].mxu0
        %345 = vmatprep.mubr.f32.mxu0 0.0
        %346 = vmatmul.mubr.f32.gmra.mrb[0].mxu0 %v258
        %v347 = vpop.f32.mrb[0].mxu0
        %v348 = vadd.f32 0.0, %v347
        %v349 = vpop.f32.mrb[0].mxu0
        %350 = vmatprep.mubr.f32.mxu0 0.0
        %351 = vmatmul.mubr.f32.gmra.mrb[0].mxu0 %v260
        %v352 = vpop.f32.mrb[0].mxu0
        %v353 = vadd.f32 0.0, %v352
        %v354 = vpop.f32.mrb[0].mxu0
        %355 = vmatprep.mubr.f32.mxu0 0.0
        %356 = vmatmul.mubr.f32.gmra.mrb[0].mxu0 %v262
        %v357 = vpop.f32.mrb[0].mxu0
        %v358 = vadd.f32 0.0, %v357
        %v359 = vpop.f32.mrb[0].mxu0
        %360 = vmatprep.mubr.f32.mxu0 0.0
        %361 = vmatmul.mubr.f32.gmra.mrb[0].mxu0 %v264
        %v362 = vpop.f32.mrb[0].mxu0
        %v363 = vadd.f32 0.0, %v362
        %v364 = vpop.f32.mrb[0].mxu0
        %365 = vmatprep.mubr.f32.mxu0 0.0
        %366 = vmatmul.mubr.f32.gmra.mrb[0].mxu0 %v266
        %v367 = vpop.f32.mrb[0].mxu0
        %v368 = vadd.f32 0.0, %v367
        %v369 = vpop.f32.mrb[0].mxu0
        %370 = vmatprep.mubr.f32.mxu0 0.0
        %371 = vmatmul.mubr.f32.gmra.mrb[0].mxu0 %v268
        %v372 = vpop.f32.mrb[0].mxu0
        %v373 = vadd.f32 0.0, %v372
        %v374 = vpop.f32.mrb[0].mxu0
        %375 = vmatprep.mubr.f32.mxu0 0.0
        %376 = vmatmul.mubr.f32.gmra.mrb[0].mxu0 %v270
        %v377 = vpop.f32.mrb[0].mxu0
        %v378 = vadd.f32 0.0, %v377
        %v379 = vpop.f32.mrb[0].mxu0
        %380 = vdwg.mxu0
        %v381 = vsel %vm255, %v207, 0
        %v383 = vsel %vm255, %v208, 0
        %v385 = vsel %vm255, %v210, 0
        %v387 = vsel %vm255, %v211, 0
        %v389 = vsel %vm255, %v213, 0
        %v391 = vsel %vm255, %v214, 0
        %v393 = vsel %vm255, %v216, 0
        %v395 = vsel %vm255, %v217, 0
        %v398 = vsel %vm272, %v219, 0
        %400 = vmatprep.subr.mxu0 0.0
        %401 = vmatpush1.msra.mxu0 %v398
        %402 = vmatprep.subr.mxu0 0.0
        %403 = vmatpush1.msra.mxu0 0.0
        %404 = vmatprep.subr.mxu0 0.0
        %405 = vmatpush1.msra.mxu0 0.0
        %406 = vmatprep.subr.mxu0 0.0
        %407 = vmatpush1.msra.mxu0 0.0
        %408 = vmatprep.subr.mxu0 0.0
        %409 = vmatpush1.msra.mxu0 0.0
        %410 = vmatprep.subr.mxu0 0.0
        %411 = vmatpush1.msra.mxu0 0.0
        %412 = vmatprep.subr.mxu0 0.0
        %413 = vmatpush1.msra.mxu0 0.0
        %414 = vmatprep.subr.mxu0 0.0
        %415 = vmatpush1.msra.mxu0 0.0
        %416 = vmatprep.subr.mxu0 0.0
        %417 = vmatpush1.msra.mxu0 0.0
        %418 = vmatprep.subr.mxu0 0.0
        %419 = vmatpush1.msra.mxu0 0.0
        %420 = vmatprep.subr.mxu0 0.0
        %421 = vmatpush1.msra.mxu0 0.0
        %422 = vmatprep.subr.mxu0 0.0
        %423 = vmatpush1.msra.mxu0 0.0
        %424 = vmatprep.subr.mxu0 0.0
        %425 = vmatpush1.msra.mxu0 0.0
        %426 = vmatprep.subr.mxu0 0.0
        %427 = vmatpush1.msra.mxu0 0.0
        %428 = vmatprep.subr.mxu0 0.0
        %429 = vmatpush1.msra.mxu0 0.0
        %430 = vmatprep.subr.mxu0 0.0
        %431 = vmatpush1.msra.mxu0 0.0
        %432 = vmatprep.subr.mxu0 0.0
        %433 = vmatpush1.msra.mxu0 0.0
        %434 = vmatprep.subr.mxu0 0.0
        %435 = vmatpush1.msra.mxu0 0.0
        %436 = vmatprep.subr.mxu0 0.0
        %437 = vmatpush1.msra.mxu0 0.0
        %438 = vmatprep.subr.mxu0 0.0
        %439 = vmatpush1.msra.mxu0 0.0
        %440 = vmatprep.subr.mxu0 0.0
        %441 = vmatpush1.msra.mxu0 0.0
        %442 = vmatprep.subr.mxu0 0.0
        %443 = vmatpush1.msra.mxu0 0.0
        %444 = vmatprep.subr.mxu0 0.0
        %445 = vmatpush1.msra.mxu0 0.0
        %446 = vmatprep.subr.mxu0 0.0
        %447 = vmatpush1.msra.mxu0 0.0
        %448 = vmatprep.subr.mxu0 0.0
        %449 = vmatpush1.msra.mxu0 0.0
        %450 = vmatprep.subr.mxu0 0.0
        %451 = vmatpush1.msra.mxu0 0.0
        %452 = vmatprep.subr.mxu0 0.0
        %453 = vmatpush1.msra.mxu0 0.0
        %454 = vmatprep.subr.mxu0 0.0
        %455 = vmatpush1.msra.mxu0 0.0
        %456 = vmatprep.subr.mxu0 0.0
        %457 = vmatpush1.msra.mxu0 0.0
        %458 = vmatprep.subr.mxu0 0.0
        %459 = vmatpush1.msra.mxu0 0.0
        %460 = vmatprep.subr.mxu0 0.0
        %461 = vmatpush1.msra.mxu0 0.0
        %462 = vmatprep.subr.mxu0 0.0
        %463 = vmatpush1.msra.mxu0 0.0
        %464 = vmatprep.mubr.f32.mxu0 0.0
        %465 = vmatmul.mubr.f32.gmra.mrb[0].mxu0 %v381
        %v466 = vpop.f32.mrb[0].mxu0
        %v467 = vadd.f32 %v343, %v466
        %v468 = vpop.f32.mrb[0].mxu0
        %469 = vmatprep.mubr.f32.mxu0 0.0
        %470 = vmatmul.mubr.f32.gmra.mrb[0].mxu0 %v383
        %v471 = vpop.f32.mrb[0].mxu0
        %v472 = vadd.f32 %v348, %v471
        %v473 = vpop.f32.mrb[0].mxu0
        %474 = vmatprep.mubr.f32.mxu0 0.0
        %475 = vmatmul.mubr.f32.gmra.mrb[0].mxu0 %v385
        %v476 = vpop.f32.mrb[0].mxu0
        %v477 = vadd.f32 %v353, %v476
        %v478 = vpop.f32.mrb[0].mxu0
        %479 = vmatprep.mubr.f32.mxu0 0.0
        %480 = vmatmul.mubr.f32.gmra.mrb[0].mxu0 %v387
        %v481 = vpop.f32.mrb[0].mxu0
        %v482 = vadd.f32 %v358, %v481
        %v483 = vpop.f32.mrb[0].mxu0
        %484 = vmatprep.mubr.f32.mxu0 0.0
        %485 = vmatmul.mubr.f32.gmra.mrb[0].mxu0 %v389
        %v486 = vpop.f32.mrb[0].mxu0
        %v487 = vadd.f32 %v363, %v486
        %v488 = vpop.f32.mrb[0].mxu0
        %489 = vmatprep.mubr.f32.mxu0 0.0
        %490 = vmatmul.mubr.f32.gmra.mrb[0].mxu0 %v391
        %v491 = vpop.f32.mrb[0].mxu0
        %v492 = vadd.f32 %v368, %v491
        %v493 = vpop.f32.mrb[0].mxu0
        %494 = vmatprep.mubr.f32.mxu0 0.0
        %495 = vmatmul.mubr.f32.gmra.mrb[0].mxu0 %v393
        %v496 = vpop.f32.mrb[0].mxu0
        %v497 = vadd.f32 %v373, %v496
        %v498 = vpop.f32.mrb[0].mxu0
        %499 = vmatprep.mubr.f32.mxu0 0.0
        %500 = vmatmul.mubr.f32.gmra.mrb[0].mxu0 %v395
        %v501 = vpop.f32.mrb[0].mxu0
        %v502 = vadd.f32 %v378, %v501
        %v503 = vpop.f32.mrb[0].mxu0
        %504 = vdwg.mxu0
        %vm505 = vcmask 1045504
        %v506 = vrot.slane %v207, 2
        %v507 = vrot.slane %v208, 2
        %v508 = vsel %vm505, %v506, %v507
        %v509 = vrot.slane %v209, 2
        %v510 = vsel %vm505, %v507, %v509
        %v511 = vrot.slane %v210, 2
        %v512 = vrot.slane %v211, 2
        %v513 = vsel %vm505, %v511, %v512
        %v514 = vrot.slane %v212, 2
        %v515 = vsel %vm505, %v512, %v514
        %v516 = vrot.slane %v213, 2
        %v517 = vrot.slane %v214, 2
        %v518 = vsel %vm505, %v516, %v517
        %v519 = vrot.slane %v215, 2
        %v520 = vsel %vm505, %v517, %v519
        %v521 = vrot.slane %v216, 2
        %v522 = vrot.slane %v217, 2
        %v523 = vsel %vm505, %v521, %v522
        %v524 = vrot.slane %v218, 2
        %v525 = vsel %vm505, %v522, %v524
        %s526 = scalar_lea.vmem %s1, 8
        %v527 = vld [vmem:[%s526] sm:$0xf]
        %v528 = vsel %vm255, %v508, 0
        %v530 = vsel %vm255, %v510, 0
        %v532 = vsel %vm255, %v513, 0
        %v534 = vsel %vm255, %v515, 0
        %v536 = vsel %vm255, %v518, 0
        %v538 = vsel %vm255, %v520, 0
        %v540 = vsel %vm255, %v523, 0
        %v542 = vsel %vm255, %v525, 0
        %v545 = vsel %vm272, %v527, 0
        %547 = vmatprep.subr.mxu0 0.0
        %548 = vmatpush1.msra.mxu0 %v545
        %549 = vmatprep.subr.mxu0 0.0
        %550 = vmatpush1.msra.mxu0 0.0
        %551 = vmatprep.subr.mxu0 0.0
        %552 = vmatpush1.msra.mxu0 0.0
        %553 = vmatprep.subr.mxu0 0.0
        %554 = vmatpush1.msra.mxu0 0.0
        %555 = vmatprep.subr.mxu0 0.0
        %556 = vmatpush1.msra.mxu0 0.0
        %557 = vmatprep.subr.mxu0 0.0
        %558 = vmatpush1.msra.mxu0 0.0
        %559 = vmatprep.subr.mxu0 0.0
        %560 = vmatpush1.msra.mxu0 0.0
        %561 = vmatprep.subr.mxu0 0.0
        %562 = vmatpush1.msra.mxu0 0.0
        %563 = vmatprep.subr.mxu0 0.0
        %564 = vmatpush1.msra.mxu0 0.0
        %565 = vmatprep.subr.mxu0 0.0
        %566 = vmatpush1.msra.mxu0 0.0
        %567 = vmatprep.subr.mxu0 0.0
        %568 = vmatpush1.msra.mxu0 0.0
        %569 = vmatprep.subr.mxu0 0.0
        %570 = vmatpush1.msra.mxu0 0.0
        %571 = vmatprep.subr.mxu0 0.0
        %572 = vmatpush1.msra.mxu0 0.0
        %573 = vmatprep.subr.mxu0 0.0
        %574 = vmatpush1.msra.mxu0 0.0
        %575 = vmatprep.subr.mxu0 0.0
        %576 = vmatpush1.msra.mxu0 0.0
        %577 = vmatprep.subr.mxu0 0.0
        %578 = vmatpush1.msra.mxu0 0.0
        %579 = vmatprep.subr.mxu0 0.0
        %580 = vmatpush1.msra.mxu0 0.0
        %581 = vmatprep.subr.mxu0 0.0
        %582 = vmatpush1.msra.mxu0 0.0
        %583 = vmatprep.subr.mxu0 0.0
        %584 = vmatpush1.msra.mxu0 0.0
        %585 = vmatprep.subr.mxu0 0.0
        %586 = vmatpush1.msra.mxu0 0.0
        %587 = vmatprep.subr.mxu0 0.0
        %588 = vmatpush1.msra.mxu0 0.0
        %589 = vmatprep.subr.mxu0 0.0
        %590 = vmatpush1.msra.mxu0 0.0
        %591 = vmatprep.subr.mxu0 0.0
        %592 = vmatpush1.msra.mxu0 0.0
        %593 = vmatprep.subr.mxu0 0.0
        %594 = vmatpush1.msra.mxu0 0.0
        %595 = vmatprep.subr.mxu0 0.0
        %596 = vmatpush1.msra.mxu0 0.0
        %597 = vmatprep.subr.mxu0 0.0
        %598 = vmatpush1.msra.mxu0 0.0
        %599 = vmatprep.subr.mxu0 0.0
        %600 = vmatpush1.msra.mxu0 0.0
        %601 = vmatprep.subr.mxu0 0.0
        %602 = vmatpush1.msra.mxu0 0.0
        %603 = vmatprep.subr.mxu0 0.0
        %604 = vmatpush1.msra.mxu0 0.0
        %605 = vmatprep.subr.mxu0 0.0
        %606 = vmatpush1.msra.mxu0 0.0
        %607 = vmatprep.subr.mxu0 0.0
        %608 = vmatpush1.msra.mxu0 0.0
        %609 = vmatprep.subr.mxu0 0.0
        %610 = vmatpush1.msra.mxu0 0.0
        %611 = vmatprep.mubr.f32.mxu0 0.0
        %612 = vmatmul.mubr.f32.gmra.mrb[0].mxu0 %v528
        %v613 = vpop.f32.mrb[0].mxu0
        %v614 = vadd.f32 0.0, %v613
        %v615 = vpop.f32.mrb[0].mxu0
        %616 = vmatprep.mubr.f32.mxu0 0.0
        %617 = vmatmul.mubr.f32.gmra.mrb[0].mxu0 %v530
        %v618 = vpop.f32.mrb[0].mxu0
        %v619 = vadd.f32 0.0, %v618
        %v620 = vpop.f32.mrb[0].mxu0
        %621 = vmatprep.mubr.f32.mxu0 0.0
        %622 = vmatmul.mubr.f32.gmra.mrb[0].mxu0 %v532
        %v623 = vpop.f32.mrb[0].mxu0
        %v624 = vadd.f32 0.0, %v623
        %v625 = vpop.f32.mrb[0].mxu0
        %626 = vmatprep.mubr.f32.mxu0 0.0
        %627 = vmatmul.mubr.f32.gmra.mrb[0].mxu0 %v534
        %v628 = vpop.f32.mrb[0].mxu0
        %v629 = vadd.f32 0.0, %v628
        %v630 = vpop.f32.mrb[0].mxu0
        %631 = vmatprep.mubr.f32.mxu0 0.0
        %632 = vmatmul.mubr.f32.gmra.mrb[0].mxu0 %v536
        %v633 = vpop.f32.mrb[0].mxu0
        %v634 = vadd.f32 0.0, %v633
        %v635 = vpop.f32.mrb[0].mxu0
        %636 = vmatprep.mubr.f32.mxu0 0.0
        %637 = vmatmul.mubr.f32.gmra.mrb[0].mxu0 %v538
        %v638 = vpop.f32.mrb[0].mxu0
        %v639 = vadd.f32 0.0, %v638
        %v640 = vpop.f32.mrb[0].mxu0
        %641 = vmatprep.mubr.f32.mxu0 0.0
        %642 = vmatmul.mubr.f32.gmra.mrb[0].mxu0 %v540
        %v643 = vpop.f32.mrb[0].mxu0
        %v644 = vadd.f32 0.0, %v643
        %v645 = vpop.f32.mrb[0].mxu0
        %646 = vmatprep.mubr.f32.mxu0 0.0
        %647 = vmatmul.mubr.f32.gmra.mrb[0].mxu0 %v542
        %v648 = vpop.f32.mrb[0].mxu0
        %v649 = vadd.f32 0.0, %v648
        %v650 = vpop.f32.mrb[0].mxu0
        %651 = vdwg.mxu0
        %v652 = vadd.f32 %v467, %v614
        %v653 = vadd.f32 %v472, %v619
        %v654 = vadd.f32 %v477, %v624
        %v655 = vadd.f32 %v482, %v629
        %v656 = vadd.f32 %v487, %v634
        %v657 = vadd.f32 %v492, %v639
        %v658 = vadd.f32 %v497, %v644
        %v659 = vadd.f32 %v502, %v649
        %s660 = sadd.s32 %s204, 1
        %s661 = smul.u32 %s660, 24
        %s662 = scalar_lea.vmem %s199, %s661
        %v663 = vld [vmem:[%s662] sm:$0xff]
        %v664 = vld [vmem:[%s662 + $0x8] sm:$0xff]
        %v665 = vld [vmem:[%s662 + $0x10] sm:$0x3]
        %v666 = vld [vmem:[%s662 + $0x18] sm:$0xff]
        %v667 = vld [vmem:[%s662 + $0x20] sm:$0xff]
        %v668 = vld [vmem:[%s662 + $0x28] sm:$0x3]
        %v669 = vld [vmem:[%s662 + $0x30] sm:$0xff]
        %v670 = vld [vmem:[%s662 + $0x38] sm:$0xff]
        %v671 = vld [vmem:[%s662 + $0x40] sm:$0x3]
        %v672 = vld [vmem:[%s662 + $0x48] sm:$0xff]
        %v673 = vld [vmem:[%s662 + $0x50] sm:$0xff]
        %v674 = vld [vmem:[%s662 + $0x58] sm:$0x3]
        %s675 = scalar_lea.vmem %s1, 12
        %v676 = vld [vmem:[%s675] sm:$0xf]
        %v678 = vsel %vm255, %v663, 0
        %v681 = vsel %vm255, %v664, 0
        %v684 = vsel %vm255, %v666, 0
        %v687 = vsel %vm255, %v667, 0
        %v690 = vsel %vm255, %v669, 0
        %v693 = vsel %vm255, %v670, 0
        %v696 = vsel %vm255, %v672, 0
        %v699 = vsel %vm255, %v673, 0
        %v702 = vsel %vm272, %v676, 0
        %704 = vmatprep.subr.mxu0 0.0
        %705 = vmatpush1.msra.mxu0 %v702
        %706 = vmatprep.subr.mxu0 0.0
        %707 = vmatpush1.msra.mxu0 0.0
        %708 = vmatprep.subr.mxu0 0.0
        %709 = vmatpush1.msra.mxu0 0.0
        %710 = vmatprep.subr.mxu0 0.0
        %711 = vmatpush1.msra.mxu0 0.0
        %712 = vmatprep.subr.mxu0 0.0
        %713 = vmatpush1.msra.mxu0 0.0
        %714 = vmatprep.subr.mxu0 0.0
        %715 = vmatpush1.msra.mxu0 0.0
        %716 = vmatprep.subr.mxu0 0.0
        %717 = vmatpush1.msra.mxu0 0.0
        %718 = vmatprep.subr.mxu0 0.0
        %719 = vmatpush1.msra.mxu0 0.0
        %720 = vmatprep.subr.mxu0 0.0
        %721 = vmatpush1.msra.mxu0 0.0
        %722 = vmatprep.subr.mxu0 0.0
        %723 = vmatpush1.msra.mxu0 0.0
        %724 = vmatprep.subr.mxu0 0.0
        %725 = vmatpush1.msra.mxu0 0.0
        %726 = vmatprep.subr.mxu0 0.0
        %727 = vmatpush1.msra.mxu0 0.0
        %728 = vmatprep.subr.mxu0 0.0
        %729 = vmatpush1.msra.mxu0 0.0
        %730 = vmatprep.subr.mxu0 0.0
        %731 = vmatpush1.msra.mxu0 0.0
        %732 = vmatprep.subr.mxu0 0.0
        %733 = vmatpush1.msra.mxu0 0.0
        %734 = vmatprep.subr.mxu0 0.0
        %735 = vmatpush1.msra.mxu0 0.0
        %736 = vmatprep.subr.mxu0 0.0
        %737 = vmatpush1.msra.mxu0 0.0
        %738 = vmatprep.subr.mxu0 0.0
        %739 = vmatpush1.msra.mxu0 0.0
        %740 = vmatprep.subr.mxu0 0.0
        %741 = vmatpush1.msra.mxu0 0.0
        %742 = vmatprep.subr.mxu0 0.0
        %743 = vmatpush1.msra.mxu0 0.0
        %744 = vmatprep.subr.mxu0 0.0
        %745 = vmatpush1.msra.mxu0 0.0
        %746 = vmatprep.subr.mxu0 0.0
        %747 = vmatpush1.msra.mxu0 0.0
        %748 = vmatprep.subr.mxu0 0.0
        %749 = vmatpush1.msra.mxu0 0.0
        %750 = vmatprep.subr.mxu0 0.0
        %751 = vmatpush1.msra.mxu0 0.0
        %752 = vmatprep.subr.mxu0 0.0
        %753 = vmatpush1.msra.mxu0 0.0
        %754 = vmatprep.subr.mxu0 0.0
        %755 = vmatpush1.msra.mxu0 0.0
        %756 = vmatprep.subr.mxu0 0.0
        %757 = vmatpush1.msra.mxu0 0.0
        %758 = vmatprep.subr.mxu0 0.0
        %759 = vmatpush1.msra.mxu0 0.0
        %760 = vmatprep.subr.mxu0 0.0
        %761 = vmatpush1.msra.mxu0 0.0
        %762 = vmatprep.subr.mxu0 0.0
        %763 = vmatpush1.msra.mxu0 0.0
        %764 = vmatprep.subr.mxu0 0.0
        %765 = vmatpush1.msra.mxu0 0.0
        %766 = vmatprep.subr.mxu0 0.0
        %767 = vmatpush1.msra.mxu0 0.0
        %768 = vmatprep.mubr.f32.mxu0 0.0
        %769 = vmatmul.mubr.f32.gmra.mrb[0].mxu0 %v678
        %v770 = vpop.f32.mrb[0].mxu0
        %v771 = vadd.f32 0.0, %v770
        %v772 = vpop.f32.mrb[0].mxu0
        %773 = vmatprep.mubr.f32.mxu0 0.0
        %774 = vmatmul.mubr.f32.gmra.mrb[0].mxu0 %v681
        %v775 = vpop.f32.mrb[0].mxu0
        %v776 = vadd.f32 0.0, %v775
        %v777 = vpop.f32.mrb[0].mxu0
        %778 = vmatprep.mubr.f32.mxu0 0.0
        %779 = vmatmul.mubr.f32.gmra.mrb[0].mxu0 %v684
        %v780 = vpop.f32.mrb[0].mxu0
        %v781 = vadd.f32 0.0, %v780
        %v782 = vpop.f32.mrb[0].mxu0
        %783 = vmatprep.mubr.f32.mxu0 0.0
        %784 = vmatmul.mubr.f32.gmra.mrb[0].mxu0 %v687
        %v785 = vpop.f32.mrb[0].mxu0
        %v786 = vadd.f32 0.0, %v785
        %v787 = vpop.f32.mrb[0].mxu0
        %788 = vmatprep.mubr.f32.mxu0 0.0
        %789 = vmatmul.mubr.f32.gmra.mrb[0].mxu0 %v690
        %v790 = vpop.f32.mrb[0].mxu0
        %v791 = vadd.f32 0.0, %v790
        %v792 = vpop.f32.mrb[0].mxu0
        %793 = vmatprep.mubr.f32.mxu0 0.0
        %794 = vmatmul.mubr.f32.gmra.mrb[0].mxu0 %v693
        %v795 = vpop.f32.mrb[0].mxu0
        %v796 = vadd.f32 0.0, %v795
        %v797 = vpop.f32.mrb[0].mxu0
        %798 = vmatprep.mubr.f32.mxu0 0.0
        %799 = vmatmul.mubr.f32.gmra.mrb[0].mxu0 %v696
        %v800 = vpop.f32.mrb[0].mxu0
        %v801 = vadd.f32 0.0, %v800
        %v802 = vpop.f32.mrb[0].mxu0
        %803 = vmatprep.mubr.f32.mxu0 0.0
        %804 = vmatmul.mubr.f32.gmra.mrb[0].mxu0 %v699
        %v805 = vpop.f32.mrb[0].mxu0
        %v806 = vadd.f32 0.0, %v805
        %v807 = vpop.f32.mrb[0].mxu0
        %808 = vdwg.mxu0
        %v809 = vadd.f32 %v652, %v771
        %v810 = vadd.f32 %v653, %v776
        %v811 = vadd.f32 %v654, %v781
        %v812 = vadd.f32 %v655, %v786
        %v813 = vadd.f32 %v656, %v791
        %v814 = vadd.f32 %v657, %v796
        %v815 = vadd.f32 %v658, %v801
        %v816 = vadd.f32 %v659, %v806
        %v821 = vrot.slane %v663, 1
        %v822 = vrot.slane %v664, 1
        %v823 = vsel %vm232, %v821, %v822
        %v824 = vrot.slane %v665, 1
        %v825 = vsel %vm232, %v822, %v824
        %v826 = vrot.slane %v666, 1
        %v827 = vrot.slane %v667, 1
        %v828 = vsel %vm232, %v826, %v827
        %v829 = vrot.slane %v668, 1
        %v830 = vsel %vm232, %v827, %v829
        %v831 = vrot.slane %v669, 1
        %v832 = vrot.slane %v670, 1
        %v833 = vsel %vm232, %v831, %v832
        %v834 = vrot.slane %v671, 1
        %v835 = vsel %vm232, %v832, %v834
        %v836 = vrot.slane %v672, 1
        %v837 = vrot.slane %v673, 1
        %v838 = vsel %vm232, %v836, %v837
        %v839 = vrot.slane %v674, 1
        %v840 = vsel %vm232, %v837, %v839
        %s841 = scalar_lea.vmem %s1, 16
        %v842 = vld [vmem:[%s841] sm:$0xf]
        %v843 = vsel %vm255, %v823, 0
        %v845 = vsel %vm255, %v825, 0
        %v847 = vsel %vm255, %v828, 0
        %v849 = vsel %vm255, %v830, 0
        %v851 = vsel %vm255, %v833, 0
        %v853 = vsel %vm255, %v835, 0
        %v855 = vsel %vm255, %v838, 0
        %v857 = vsel %vm255, %v840, 0
        %v860 = vsel %vm272, %v842, 0
        %862 = vmatprep.subr.mxu0 0.0
        %863 = vmatpush1.msra.mxu0 %v860
        %864 = vmatprep.subr.mxu0 0.0
        %865 = vmatpush1.msra.mxu0 0.0
        %866 = vmatprep.subr.mxu0 0.0
        %867 = vmatpush1.msra.mxu0 0.0
        %868 = vmatprep.subr.mxu0 0.0
        %869 = vmatpush1.msra.mxu0 0.0
        %870 = vmatprep.subr.mxu0 0.0
        %871 = vmatpush1.msra.mxu0 0.0
        %872 = vmatprep.subr.mxu0 0.0
        %873 = vmatpush1.msra.mxu0 0.0
        %874 = vmatprep.subr.mxu0 0.0
        %875 = vmatpush1.msra.mxu0 0.0
        %876 = vmatprep.subr.mxu0 0.0
        %877 = vmatpush1.msra.mxu0 0.0
        %878 = vmatprep.subr.mxu0 0.0
        %879 = vmatpush1.msra.mxu0 0.0
        %880 = vmatprep.subr.mxu0 0.0
        %881 = vmatpush1.msra.mxu0 0.0
        %882 = vmatprep.subr.mxu0 0.0
        %883 = vmatpush1.msra.mxu0 0.0
        %884 = vmatprep.subr.mxu0 0.0
        %885 = vmatpush1.msra.mxu0 0.0
        %886 = vmatprep.subr.mxu0 0.0
        %887 = vmatpush1.msra.mxu0 0.0
        %888 = vmatprep.subr.mxu0 0.0
        %889 = vmatpush1.msra.mxu0 0.0
        %890 = vmatprep.subr.mxu0 0.0
        %891 = vmatpush1.msra.mxu0 0.0
        %892 = vmatprep.subr.mxu0 0.0
        %893 = vmatpush1.msra.mxu0 0.0
        %894 = vmatprep.subr.mxu0 0.0
        %895 = vmatpush1.msra.mxu0 0.0
        %896 = vmatprep.subr.mxu0 0.0
        %897 = vmatpush1.msra.mxu0 0.0
        %898 = vmatprep.subr.mxu0 0.0
        %899 = vmatpush1.msra.mxu0 0.0
        %900 = vmatprep.subr.mxu0 0.0
        %901 = vmatpush1.msra.mxu0 0.0
        %902 = vmatprep.subr.mxu0 0.0
        %903 = vmatpush1.msra.mxu0 0.0
        %904 = vmatprep.subr.mxu0 0.0
        %905 = vmatpush1.msra.mxu0 0.0
        %906 = vmatprep.subr.mxu0 0.0
        %907 = vmatpush1.msra.mxu0 0.0
        %908 = vmatprep.subr.mxu0 0.0
        %909 = vmatpush1.msra.mxu0 0.0
        %910 = vmatprep.subr.mxu0 0.0
        %911 = vmatpush1.msra.mxu0 0.0
        %912 = vmatprep.subr.mxu0 0.0
        %913 = vmatpush1.msra.mxu0 0.0
        %914 = vmatprep.subr.mxu0 0.0
        %915 = vmatpush1.msra.mxu0 0.0
        %916 = vmatprep.subr.mxu0 0.0
        %917 = vmatpush1.msra.mxu0 0.0
        %918 = vmatprep.subr.mxu0 0.0
        %919 = vmatpush1.msra.mxu0 0.0
        %920 = vmatprep.subr.mxu0 0.0
        %921 = vmatpush1.msra.mxu0 0.0
        %922 = vmatprep.subr.mxu0 0.0
        %923 = vmatpush1.msra.mxu0 0.0
        %924 = vmatprep.subr.mxu0 0.0
        %925 = vmatpush1.msra.mxu0 0.0
        %926 = vmatprep.mubr.f32.mxu0 0.0
        %927 = vmatmul.mubr.f32.gmra.mrb[0].mxu0 %v843
        %v928 = vpop.f32.mrb[0].mxu0
        %v929 = vadd.f32 0.0, %v928
        %v930 = vpop.f32.mrb[0].mxu0
        %931 = vmatprep.mubr.f32.mxu0 0.0
        %932 = vmatmul.mubr.f32.gmra.mrb[0].mxu0 %v845
        %v933 = vpop.f32.mrb[0].mxu0
        %v934 = vadd.f32 0.0, %v933
        %v935 = vpop.f32.mrb[0].mxu0
        %936 = vmatprep.mubr.f32.mxu0 0.0
        %937 = vmatmul.mubr.f32.gmra.mrb[0].mxu0 %v847
        %v938 = vpop.f32.mrb[0].mxu0
        %v939 = vadd.f32 0.0, %v938
        %v940 = vpop.f32.mrb[0].mxu0
        %941 = vmatprep.mubr.f32.mxu0 0.0
        %942 = vmatmul.mubr.f32.gmra.mrb[0].mxu0 %v849
        %v943 = vpop.f32.mrb[0].mxu0
        %v944 = vadd.f32 0.0, %v943
        %v945 = vpop.f32.mrb[0].mxu0
        %946 = vmatprep.mubr.f32.mxu0 0.0
        %947 = vmatmul.mubr.f32.gmra.mrb[0].mxu0 %v851
        %v948 = vpop.f32.mrb[0].mxu0
        %v949 = vadd.f32 0.0, %v948
        %v950 = vpop.f32.mrb[0].mxu0
        %951 = vmatprep.mubr.f32.mxu0 0.0
        %952 = vmatmul.mubr.f32.gmra.mrb[0].mxu0 %v853
        %v953 = vpop.f32.mrb[0].mxu0
        %v954 = vadd.f32 0.0, %v953
        %v955 = vpop.f32.mrb[0].mxu0
        %956 = vmatprep.mubr.f32.mxu0 0.0
        %957 = vmatmul.mubr.f32.gmra.mrb[0].mxu0 %v855
        %v958 = vpop.f32.mrb[0].mxu0
        %v959 = vadd.f32 0.0, %v958
        %v960 = vpop.f32.mrb[0].mxu0
        %961 = vmatprep.mubr.f32.mxu0 0.0
        %962 = vmatmul.mubr.f32.gmra.mrb[0].mxu0 %v857
        %v963 = vpop.f32.mrb[0].mxu0
        %v964 = vadd.f32 0.0, %v963
        %v965 = vpop.f32.mrb[0].mxu0
        %966 = vdwg.mxu0
        %v967 = vadd.f32 %v809, %v929
        %v968 = vadd.f32 %v810, %v934
        %v969 = vadd.f32 %v811, %v939
        %v970 = vadd.f32 %v812, %v944
        %v971 = vadd.f32 %v813, %v949
        %v972 = vadd.f32 %v814, %v954
        %v973 = vadd.f32 %v815, %v959
        %v974 = vadd.f32 %v816, %v964
        %v975 = vrot.slane %v663, 2
        %v976 = vrot.slane %v664, 2
        %v977 = vsel %vm505, %v975, %v976
        %v978 = vrot.slane %v665, 2
        %v979 = vsel %vm505, %v976, %v978
        %v980 = vrot.slane %v666, 2
        %v981 = vrot.slane %v667, 2
        %v982 = vsel %vm505, %v980, %v981
        %v983 = vrot.slane %v668, 2
        %v984 = vsel %vm505, %v981, %v983
        %v985 = vrot.slane %v669, 2
        %v986 = vrot.slane %v670, 2
        %v987 = vsel %vm505, %v985, %v986
        %v988 = vrot.slane %v671, 2
        %v989 = vsel %vm505, %v986, %v988
        %v990 = vrot.slane %v672, 2
        %v991 = vrot.slane %v673, 2
        %v992 = vsel %vm505, %v990, %v991
        %v993 = vrot.slane %v674, 2
        %v994 = vsel %vm505, %v991, %v993
        %s995 = scalar_lea.vmem %s1, 20
        %v996 = vld [vmem:[%s995] sm:$0xf]
        %v997 = vsel %vm255, %v977, 0
        %v999 = vsel %vm255, %v979, 0
        %v1001 = vsel %vm255, %v982, 0
        %v1003 = vsel %vm255, %v984, 0
        %v1005 = vsel %vm255, %v987, 0
        %v1007 = vsel %vm255, %v989, 0
        %v1009 = vsel %vm255, %v992, 0
        %v1011 = vsel %vm255, %v994, 0
        %v1014 = vsel %vm272, %v996, 0
        %1016 = vmatprep.subr.mxu0 0.0
        %1017 = vmatpush1.msra.mxu0 %v1014
        %1018 = vmatprep.subr.mxu0 0.0
        %1019 = vmatpush1.msra.mxu0 0.0
        %1020 = vmatprep.subr.mxu0 0.0
        %1021 = vmatpush1.msra.mxu0 0.0
        %1022 = vmatprep.subr.mxu0 0.0
        %1023 = vmatpush1.msra.mxu0 0.0
        %1024 = vmatprep.subr.mxu0 0.0
        %1025 = vmatpush1.msra.mxu0 0.0
        %1026 = vmatprep.subr.mxu0 0.0
        %1027 = vmatpush1.msra.mxu0 0.0
        %1028 = vmatprep.subr.mxu0 0.0
        %1029 = vmatpush1.msra.mxu0 0.0
        %1030 = vmatprep.subr.mxu0 0.0
        %1031 = vmatpush1.msra.mxu0 0.0
        %1032 = vmatprep.subr.mxu0 0.0
        %1033 = vmatpush1.msra.mxu0 0.0
        %1034 = vmatprep.subr.mxu0 0.0
        %1035 = vmatpush1.msra.mxu0 0.0
        %1036 = vmatprep.subr.mxu0 0.0
        %1037 = vmatpush1.msra.mxu0 0.0
        %1038 = vmatprep.subr.mxu0 0.0
        %1039 = vmatpush1.msra.mxu0 0.0
        %1040 = vmatprep.subr.mxu0 0.0
        %1041 = vmatpush1.msra.mxu0 0.0
        %1042 = vmatprep.subr.mxu0 0.0
        %1043 = vmatpush1.msra.mxu0 0.0
        %1044 = vmatprep.subr.mxu0 0.0
        %1045 = vmatpush1.msra.mxu0 0.0
        %1046 = vmatprep.subr.mxu0 0.0
        %1047 = vmatpush1.msra.mxu0 0.0
        %1048 = vmatprep.subr.mxu0 0.0
        %1049 = vmatpush1.msra.mxu0 0.0
        %1050 = vmatprep.subr.mxu0 0.0
        %1051 = vmatpush1.msra.mxu0 0.0
        %1052 = vmatprep.subr.mxu0 0.0
        %1053 = vmatpush1.msra.mxu0 0.0
        %1054 = vmatprep.subr.mxu0 0.0
        %1055 = vmatpush1.msra.mxu0 0.0
        %1056 = vmatprep.subr.mxu0 0.0
        %1057 = vmatpush1.msra.mxu0 0.0
        %1058 = vmatprep.subr.mxu0 0.0
        %1059 = vmatpush1.msra.mxu0 0.0
        %1060 = vmatprep.subr.mxu0 0.0
        %1061 = vmatpush1.msra.mxu0 0.0
        %1062 = vmatprep.subr.mxu0 0.0
        %1063 = vmatpush1.msra.mxu0 0.0
        %1064 = vmatprep.subr.mxu0 0.0
        %1065 = vmatpush1.msra.mxu0 0.0
        %1066 = vmatprep.subr.mxu0 0.0
        %1067 = vmatpush1.msra.mxu0 0.0
        %1068 = vmatprep.subr.mxu0 0.0
        %1069 = vmatpush1.msra.mxu0 0.0
        %1070 = vmatprep.subr.mxu0 0.0
        %1071 = vmatpush1.msra.mxu0 0.0
        %1072 = vmatprep.subr.mxu0 0.0
        %1073 = vmatpush1.msra.mxu0 0.0
        %1074 = vmatprep.subr.mxu0 0.0
        %1075 = vmatpush1.msra.mxu0 0.0
        %1076 = vmatprep.subr.mxu0 0.0
        %1077 = vmatpush1.msra.mxu0 0.0
        %1078 = vmatprep.subr.mxu0 0.0
        %1079 = vmatpush1.msra.mxu0 0.0
        %1080 = vmatprep.mubr.f32.mxu0 0.0
        %1081 = vmatmul.mubr.f32.gmra.mrb[0].mxu0 %v997
        %v1082 = vpop.f32.mrb[0].mxu0
        %v1083 = vadd.f32 0.0, %v1082
        %v1084 = vpop.f32.mrb[0].mxu0
        %1085 = vmatprep.mubr.f32.mxu0 0.0
        %1086 = vmatmul.mubr.f32.gmra.mrb[0].mxu0 %v999
        %v1087 = vpop.f32.mrb[0].mxu0
        %v1088 = vadd.f32 0.0, %v1087
        %v1089 = vpop.f32.mrb[0].mxu0
        %1090 = vmatprep.mubr.f32.mxu0 0.0
        %1091 = vmatmul.mubr.f32.gmra.mrb[0].mxu0 %v1001
        %v1092 = vpop.f32.mrb[0].mxu0
        %v1093 = vadd.f32 0.0, %v1092
        %v1094 = vpop.f32.mrb[0].mxu0
        %1095 = vmatprep.mubr.f32.mxu0 0.0
        %1096 = vmatmul.mubr.f32.gmra.mrb[0].mxu0 %v1003
        %v1097 = vpop.f32.mrb[0].mxu0
        %v1098 = vadd.f32 0.0, %v1097
        %v1099 = vpop.f32.mrb[0].mxu0
        %1100 = vmatprep.mubr.f32.mxu0 0.0
        %1101 = vmatmul.mubr.f32.gmra.mrb[0].mxu0 %v1005
        %v1102 = vpop.f32.mrb[0].mxu0
        %v1103 = vadd.f32 0.0, %v1102
        %v1104 = vpop.f32.mrb[0].mxu0
        %1105 = vmatprep.mubr.f32.mxu0 0.0
        %1106 = vmatmul.mubr.f32.gmra.mrb[0].mxu0 %v1007
        %v1107 = vpop.f32.mrb[0].mxu0
        %v1108 = vadd.f32 0.0, %v1107
        %v1109 = vpop.f32.mrb[0].mxu0
        %1110 = vmatprep.mubr.f32.mxu0 0.0
        %1111 = vmatmul.mubr.f32.gmra.mrb[0].mxu0 %v1009
        %v1112 = vpop.f32.mrb[0].mxu0
        %v1113 = vadd.f32 0.0, %v1112
        %v1114 = vpop.f32.mrb[0].mxu0
        %1115 = vmatprep.mubr.f32.mxu0 0.0
        %1116 = vmatmul.mubr.f32.gmra.mrb[0].mxu0 %v1011
        %v1117 = vpop.f32.mrb[0].mxu0
        %v1118 = vadd.f32 0.0, %v1117
        %v1119 = vpop.f32.mrb[0].mxu0
        %1120 = vdwg.mxu0
        %v1121 = vadd.f32 %v967, %v1083
        %v1122 = vadd.f32 %v968, %v1088
        %v1123 = vadd.f32 %v969, %v1093
        %v1124 = vadd.f32 %v970, %v1098
        %v1125 = vadd.f32 %v971, %v1103
        %v1126 = vadd.f32 %v972, %v1108
        %v1127 = vadd.f32 %v973, %v1113
        %v1128 = vadd.f32 %v974, %v1118
        %s1129 = sadd.s32 %s204, 2
        %s1130 = smul.u32 %s1129, 24
        %s1131 = scalar_lea.vmem %s199, %s1130
        %v1132 = vld [vmem:[%s1131] sm:$0xff]
        %v1133 = vld [vmem:[%s1131 + $0x8] sm:$0xff]
        %v1134 = vld [vmem:[%s1131 + $0x10] sm:$0x3]
        %v1135 = vld [vmem:[%s1131 + $0x18] sm:$0xff]
        %v1136 = vld [vmem:[%s1131 + $0x20] sm:$0xff]
        %v1137 = vld [vmem:[%s1131 + $0x28] sm:$0x3]
        %v1138 = vld [vmem:[%s1131 + $0x30] sm:$0xff]
        %v1139 = vld [vmem:[%s1131 + $0x38] sm:$0xff]
        %v1140 = vld [vmem:[%s1131 + $0x40] sm:$0x3]
        %v1141 = vld [vmem:[%s1131 + $0x48] sm:$0xff]
        %v1142 = vld [vmem:[%s1131 + $0x50] sm:$0xff]
        %v1143 = vld [vmem:[%s1131 + $0x58] sm:$0x3]
        %s1144 = scalar_lea.vmem %s1, 24
        %v1145 = vld [vmem:[%s1144] sm:$0xf]
        %v1147 = vsel %vm255, %v1132, 0
        %v1150 = vsel %vm255, %v1133, 0
        %v1153 = vsel %vm255, %v1135, 0
        %v1156 = vsel %vm255, %v1136, 0
        %v1159 = vsel %vm255, %v1138, 0
        %v1162 = vsel %vm255, %v1139, 0
        %v1165 = vsel %vm255, %v1141, 0
        %v1168 = vsel %vm255, %v1142, 0
        %v1171 = vsel %vm272, %v1145, 0
        %1173 = vmatprep.subr.mxu0 0.0
        %1174 = vmatpush1.msra.mxu0 %v1171
        %1175 = vmatprep.subr.mxu0 0.0
        %1176 = vmatpush1.msra.mxu0 0.0
        %1177 = vmatprep.subr.mxu0 0.0
        %1178 = vmatpush1.msra.mxu0 0.0
        %1179 = vmatprep.subr.mxu0 0.0
        %1180 = vmatpush1.msra.mxu0 0.0
        %1181 = vmatprep.subr.mxu0 0.0
        %1182 = vmatpush1.msra.mxu0 0.0
        %1183 = vmatprep.subr.mxu0 0.0
        %1184 = vmatpush1.msra.mxu0 0.0
        %1185 = vmatprep.subr.mxu0 0.0
        %1186 = vmatpush1.msra.mxu0 0.0
        %1187 = vmatprep.subr.mxu0 0.0
        %1188 = vmatpush1.msra.mxu0 0.0
        %1189 = vmatprep.subr.mxu0 0.0
        %1190 = vmatpush1.msra.mxu0 0.0
        %1191 = vmatprep.subr.mxu0 0.0
        %1192 = vmatpush1.msra.mxu0 0.0
        %1193 = vmatprep.subr.mxu0 0.0
        %1194 = vmatpush1.msra.mxu0 0.0
        %1195 = vmatprep.subr.mxu0 0.0
        %1196 = vmatpush1.msra.mxu0 0.0
        %1197 = vmatprep.subr.mxu0 0.0
        %1198 = vmatpush1.msra.mxu0 0.0
        %1199 = vmatprep.subr.mxu0 0.0
        %1200 = vmatpush1.msra.mxu0 0.0
        %1201 = vmatprep.subr.mxu0 0.0
        %1202 = vmatpush1.msra.mxu0 0.0
        %1203 = vmatprep.subr.mxu0 0.0
        %1204 = vmatpush1.msra.mxu0 0.0
        %1205 = vmatprep.subr.mxu0 0.0
        %1206 = vmatpush1.msra.mxu0 0.0
        %1207 = vmatprep.subr.mxu0 0.0
        %1208 = vmatpush1.msra.mxu0 0.0
        %1209 = vmatprep.subr.mxu0 0.0
        %1210 = vmatpush1.msra.mxu0 0.0
        %1211 = vmatprep.subr.mxu0 0.0
        %1212 = vmatpush1.msra.mxu0 0.0
        %1213 = vmatprep.subr.mxu0 0.0
        %1214 = vmatpush1.msra.mxu0 0.0
        %1215 = vmatprep.subr.mxu0 0.0
        %1216 = vmatpush1.msra.mxu0 0.0
        %1217 = vmatprep.subr.mxu0 0.0
        %1218 = vmatpush1.msra.mxu0 0.0
        %1219 = vmatprep.subr.mxu0 0.0
        %1220 = vmatpush1.msra.mxu0 0.0
        %1221 = vmatprep.subr.mxu0 0.0
        %1222 = vmatpush1.msra.mxu0 0.0
        %1223 = vmatprep.subr.mxu0 0.0
        %1224 = vmatpush1.msra.mxu0 0.0
        %1225 = vmatprep.subr.mxu0 0.0
        %1226 = vmatpush1.msra.mxu0 0.0
        %1227 = vmatprep.subr.mxu0 0.0
        %1228 = vmatpush1.msra.mxu0 0.0
        %1229 = vmatprep.subr.mxu0 0.0
        %1230 = vmatpush1.msra.mxu0 0.0
        %1231 = vmatprep.subr.mxu0 0.0
        %1232 = vmatpush1.msra.mxu0 0.0
        %1233 = vmatprep.subr.mxu0 0.0
        %1234 = vmatpush1.msra.mxu0 0.0
        %1235 = vmatprep.subr.mxu0 0.0
        %1236 = vmatpush1.msra.mxu0 0.0
        %1237 = vmatprep.mubr.f32.mxu0 0.0
        %1238 = vmatmul.mubr.f32.gmra.mrb[0].mxu0 %v1147
        %v1239 = vpop.f32.mrb[0].mxu0
        %v1240 = vadd.f32 0.0, %v1239
        %v1241 = vpop.f32.mrb[0].mxu0
        %1242 = vmatprep.mubr.f32.mxu0 0.0
        %1243 = vmatmul.mubr.f32.gmra.mrb[0].mxu0 %v1150
        %v1244 = vpop.f32.mrb[0].mxu0
        %v1245 = vadd.f32 0.0, %v1244
        %v1246 = vpop.f32.mrb[0].mxu0
        %1247 = vmatprep.mubr.f32.mxu0 0.0
        %1248 = vmatmul.mubr.f32.gmra.mrb[0].mxu0 %v1153
        %v1249 = vpop.f32.mrb[0].mxu0
        %v1250 = vadd.f32 0.0, %v1249
        %v1251 = vpop.f32.mrb[0].mxu0
        %1252 = vmatprep.mubr.f32.mxu0 0.0
        %1253 = vmatmul.mubr.f32.gmra.mrb[0].mxu0 %v1156
        %v1254 = vpop.f32.mrb[0].mxu0
        %v1255 = vadd.f32 0.0, %v1254
        %v1256 = vpop.f32.mrb[0].mxu0
        %1257 = vmatprep.mubr.f32.mxu0 0.0
        %1258 = vmatmul.mubr.f32.gmra.mrb[0].mxu0 %v1159
        %v1259 = vpop.f32.mrb[0].mxu0
        %v1260 = vadd.f32 0.0, %v1259
        %v1261 = vpop.f32.mrb[0].mxu0
        %1262 = vmatprep.mubr.f32.mxu0 0.0
        %1263 = vmatmul.mubr.f32.gmra.mrb[0].mxu0 %v1162
        %v1264 = vpop.f32.mrb[0].mxu0
        %v1265 = vadd.f32 0.0, %v1264
        %v1266 = vpop.f32.mrb[0].mxu0
        %1267 = vmatprep.mubr.f32.mxu0 0.0
        %1268 = vmatmul.mubr.f32.gmra.mrb[0].mxu0 %v1165
        %v1269 = vpop.f32.mrb[0].mxu0
        %v1270 = vadd.f32 0.0, %v1269
        %v1271 = vpop.f32.mrb[0].mxu0
        %1272 = vmatprep.mubr.f32.mxu0 0.0
        %1273 = vmatmul.mubr.f32.gmra.mrb[0].mxu0 %v1168
        %v1274 = vpop.f32.mrb[0].mxu0
        %v1275 = vadd.f32 0.0, %v1274
        %v1276 = vpop.f32.mrb[0].mxu0
        %1277 = vdwg.mxu0
        %v1278 = vadd.f32 %v1121, %v1240
        %v1279 = vadd.f32 %v1122, %v1245
        %v1280 = vadd.f32 %v1123, %v1250
        %v1281 = vadd.f32 %v1124, %v1255
        %v1282 = vadd.f32 %v1125, %v1260
        %v1283 = vadd.f32 %v1126, %v1265
        %v1284 = vadd.f32 %v1127, %v1270
        %v1285 = vadd.f32 %v1128, %v1275
        %v1290 = vrot.slane %v1132, 1
        %v1291 = vrot.slane %v1133, 1
        %v1292 = vsel %vm232, %v1290, %v1291
        %v1293 = vrot.slane %v1134, 1
        %v1294 = vsel %vm232, %v1291, %v1293
        %v1295 = vrot.slane %v1135, 1
        %v1296 = vrot.slane %v1136, 1
        %v1297 = vsel %vm232, %v1295, %v1296
        %v1298 = vrot.slane %v1137, 1
        %v1299 = vsel %vm232, %v1296, %v1298
        %v1300 = vrot.slane %v1138, 1
        %v1301 = vrot.slane %v1139, 1
        %v1302 = vsel %vm232, %v1300, %v1301
        %v1303 = vrot.slane %v1140, 1
        %v1304 = vsel %vm232, %v1301, %v1303
        %v1305 = vrot.slane %v1141, 1
        %v1306 = vrot.slane %v1142, 1
        %v1307 = vsel %vm232, %v1305, %v1306
        %v1308 = vrot.slane %v1143, 1
        %v1309 = vsel %vm232, %v1306, %v1308
        %s1310 = scalar_lea.vmem %s1, 28
        %v1311 = vld [vmem:[%s1310] sm:$0xf]
        %v1312 = vsel %vm255, %v1292, 0
        %v1314 = vsel %vm255, %v1294, 0
        %v1316 = vsel %vm255, %v1297, 0
        %v1318 = vsel %vm255, %v1299, 0
        %v1320 = vsel %vm255, %v1302, 0
        %v1322 = vsel %vm255, %v1304, 0
        %v1324 = vsel %vm255, %v1307, 0
        %v1326 = vsel %vm255, %v1309, 0
        %v1329 = vsel %vm272, %v1311, 0
        %1331 = vmatprep.subr.mxu0 0.0
        %1332 = vmatpush1.msra.mxu0 %v1329
        %1333 = vmatprep.subr.mxu0 0.0
        %1334 = vmatpush1.msra.mxu0 0.0
        %1335 = vmatprep.subr.mxu0 0.0
        %1336 = vmatpush1.msra.mxu0 0.0
        %1337 = vmatprep.subr.mxu0 0.0
        %1338 = vmatpush1.msra.mxu0 0.0
        %1339 = vmatprep.subr.mxu0 0.0
        %1340 = vmatpush1.msra.mxu0 0.0
        %1341 = vmatprep.subr.mxu0 0.0
        %1342 = vmatpush1.msra.mxu0 0.0
        %1343 = vmatprep.subr.mxu0 0.0
        %1344 = vmatpush1.msra.mxu0 0.0
        %1345 = vmatprep.subr.mxu0 0.0
        %1346 = vmatpush1.msra.mxu0 0.0
        %1347 = vmatprep.subr.mxu0 0.0
        %1348 = vmatpush1.msra.mxu0 0.0
        %1349 = vmatprep.subr.mxu0 0.0
        %1350 = vmatpush1.msra.mxu0 0.0
        %1351 = vmatprep.subr.mxu0 0.0
        %1352 = vmatpush1.msra.mxu0 0.0
        %1353 = vmatprep.subr.mxu0 0.0
        %1354 = vmatpush1.msra.mxu0 0.0
        %1355 = vmatprep.subr.mxu0 0.0
        %1356 = vmatpush1.msra.mxu0 0.0
        %1357 = vmatprep.subr.mxu0 0.0
        %1358 = vmatpush1.msra.mxu0 0.0
        %1359 = vmatprep.subr.mxu0 0.0
        %1360 = vmatpush1.msra.mxu0 0.0
        %1361 = vmatprep.subr.mxu0 0.0
        %1362 = vmatpush1.msra.mxu0 0.0
        %1363 = vmatprep.subr.mxu0 0.0
        %1364 = vmatpush1.msra.mxu0 0.0
        %1365 = vmatprep.subr.mxu0 0.0
        %1366 = vmatpush1.msra.mxu0 0.0
        %1367 = vmatprep.subr.mxu0 0.0
        %1368 = vmatpush1.msra.mxu0 0.0
        %1369 = vmatprep.subr.mxu0 0.0
        %1370 = vmatpush1.msra.mxu0 0.0
        %1371 = vmatprep.subr.mxu0 0.0
        %1372 = vmatpush1.msra.mxu0 0.0
        %1373 = vmatprep.subr.mxu0 0.0
        %1374 = vmatpush1.msra.mxu0 0.0
        %1375 = vmatprep.subr.mxu0 0.0
        %1376 = vmatpush1.msra.mxu0 0.0
        %1377 = vmatprep.subr.mxu0 0.0
        %1378 = vmatpush1.msra.mxu0 0.0
        %1379 = vmatprep.subr.mxu0 0.0
        %1380 = vmatpush1.msra.mxu0 0.0
        %1381 = vmatprep.subr.mxu0 0.0
        %1382 = vmatpush1.msra.mxu0 0.0
        %1383 = vmatprep.subr.mxu0 0.0
        %1384 = vmatpush1.msra.mxu0 0.0
        %1385 = vmatprep.subr.mxu0 0.0
        %1386 = vmatpush1.msra.mxu0 0.0
        %1387 = vmatprep.subr.mxu0 0.0
        %1388 = vmatpush1.msra.mxu0 0.0
        %1389 = vmatprep.subr.mxu0 0.0
        %1390 = vmatpush1.msra.mxu0 0.0
        %1391 = vmatprep.subr.mxu0 0.0
        %1392 = vmatpush1.msra.mxu0 0.0
        %1393 = vmatprep.subr.mxu0 0.0
        %1394 = vmatpush1.msra.mxu0 0.0
        %1395 = vmatprep.mubr.f32.mxu0 0.0
        %1396 = vmatmul.mubr.f32.gmra.mrb[0].mxu0 %v1312
        %v1397 = vpop.f32.mrb[0].mxu0
        %v1398 = vadd.f32 0.0, %v1397
        %v1399 = vpop.f32.mrb[0].mxu0
        %1400 = vmatprep.mubr.f32.mxu0 0.0
        %1401 = vmatmul.mubr.f32.gmra.mrb[0].mxu0 %v1314
        %v1402 = vpop.f32.mrb[0].mxu0
        %v1403 = vadd.f32 0.0, %v1402
        %v1404 = vpop.f32.mrb[0].mxu0
        %1405 = vmatprep.mubr.f32.mxu0 0.0
        %1406 = vmatmul.mubr.f32.gmra.mrb[0].mxu0 %v1316
        %v1407 = vpop.f32.mrb[0].mxu0
        %v1408 = vadd.f32 0.0, %v1407
        %v1409 = vpop.f32.mrb[0].mxu0
        %1410 = vmatprep.mubr.f32.mxu0 0.0
        %1411 = vmatmul.mubr.f32.gmra.mrb[0].mxu0 %v1318
        %v1412 = vpop.f32.mrb[0].mxu0
        %v1413 = vadd.f32 0.0, %v1412
        %v1414 = vpop.f32.mrb[0].mxu0
        %1415 = vmatprep.mubr.f32.mxu0 0.0
        %1416 = vmatmul.mubr.f32.gmra.mrb[0].mxu0 %v1320
        %v1417 = vpop.f32.mrb[0].mxu0
        %v1418 = vadd.f32 0.0, %v1417
        %v1419 = vpop.f32.mrb[0].mxu0
        %1420 = vmatprep.mubr.f32.mxu0 0.0
        %1421 = vmatmul.mubr.f32.gmra.mrb[0].mxu0 %v1322
        %v1422 = vpop.f32.mrb[0].mxu0
        %v1423 = vadd.f32 0.0, %v1422
        %v1424 = vpop.f32.mrb[0].mxu0
        %1425 = vmatprep.mubr.f32.mxu0 0.0
        %1426 = vmatmul.mubr.f32.gmra.mrb[0].mxu0 %v1324
        %v1427 = vpop.f32.mrb[0].mxu0
        %v1428 = vadd.f32 0.0, %v1427
        %v1429 = vpop.f32.mrb[0].mxu0
        %1430 = vmatprep.mubr.f32.mxu0 0.0
        %1431 = vmatmul.mubr.f32.gmra.mrb[0].mxu0 %v1326
        %v1432 = vpop.f32.mrb[0].mxu0
        %v1433 = vadd.f32 0.0, %v1432
        %v1434 = vpop.f32.mrb[0].mxu0
        %1435 = vdwg.mxu0
        %v1436 = vadd.f32 %v1278, %v1398
        %v1437 = vadd.f32 %v1279, %v1403
        %v1438 = vadd.f32 %v1280, %v1408
        %v1439 = vadd.f32 %v1281, %v1413
        %v1440 = vadd.f32 %v1282, %v1418
        %v1441 = vadd.f32 %v1283, %v1423
        %v1442 = vadd.f32 %v1284, %v1428
        %v1443 = vadd.f32 %v1285, %v1433
        %v1444 = vrot.slane %v1132, 2
        %v1445 = vrot.slane %v1133, 2
        %v1446 = vsel %vm505, %v1444, %v1445
        %v1447 = vrot.slane %v1134, 2
        %v1448 = vsel %vm505, %v1445, %v1447
        %v1449 = vrot.slane %v1135, 2
        %v1450 = vrot.slane %v1136, 2
        %v1451 = vsel %vm505, %v1449, %v1450
        %v1452 = vrot.slane %v1137, 2
        %v1453 = vsel %vm505, %v1450, %v1452
        %v1454 = vrot.slane %v1138, 2
        %v1455 = vrot.slane %v1139, 2
        %v1456 = vsel %vm505, %v1454, %v1455
        %v1457 = vrot.slane %v1140, 2
        %v1458 = vsel %vm505, %v1455, %v1457
        %v1459 = vrot.slane %v1141, 2
        %v1460 = vrot.slane %v1142, 2
        %v1461 = vsel %vm505, %v1459, %v1460
        %v1462 = vrot.slane %v1143, 2
        %v1463 = vsel %vm505, %v1460, %v1462
        %s1464 = scalar_lea.vmem %s1, 32
        %v1465 = vld [vmem:[%s1464] sm:$0xf]
        %v1466 = vsel %vm255, %v1446, 0
        %v1468 = vsel %vm255, %v1448, 0
        %v1470 = vsel %vm255, %v1451, 0
        %v1472 = vsel %vm255, %v1453, 0
        %v1474 = vsel %vm255, %v1456, 0
        %v1476 = vsel %vm255, %v1458, 0
        %v1478 = vsel %vm255, %v1461, 0
        %v1480 = vsel %vm255, %v1463, 0
        %v1483 = vsel %vm272, %v1465, 0
        %1485 = vmatprep.subr.mxu0 0.0
        %1486 = vmatpush1.msra.mxu0 %v1483
        %1487 = vmatprep.subr.mxu0 0.0
        %1488 = vmatpush1.msra.mxu0 0.0
        %1489 = vmatprep.subr.mxu0 0.0
        %1490 = vmatpush1.msra.mxu0 0.0
        %1491 = vmatprep.subr.mxu0 0.0
        %1492 = vmatpush1.msra.mxu0 0.0
        %1493 = vmatprep.subr.mxu0 0.0
        %1494 = vmatpush1.msra.mxu0 0.0
        %1495 = vmatprep.subr.mxu0 0.0
        %1496 = vmatpush1.msra.mxu0 0.0
        %1497 = vmatprep.subr.mxu0 0.0
        %1498 = vmatpush1.msra.mxu0 0.0
        %1499 = vmatprep.subr.mxu0 0.0
        %1500 = vmatpush1.msra.mxu0 0.0
        %1501 = vmatprep.subr.mxu0 0.0
        %1502 = vmatpush1.msra.mxu0 0.0
        %1503 = vmatprep.subr.mxu0 0.0
        %1504 = vmatpush1.msra.mxu0 0.0
        %1505 = vmatprep.subr.mxu0 0.0
        %1506 = vmatpush1.msra.mxu0 0.0
        %1507 = vmatprep.subr.mxu0 0.0
        %1508 = vmatpush1.msra.mxu0 0.0
        %1509 = vmatprep.subr.mxu0 0.0
        %1510 = vmatpush1.msra.mxu0 0.0
        %1511 = vmatprep.subr.mxu0 0.0
        %1512 = vmatpush1.msra.mxu0 0.0
        %1513 = vmatprep.subr.mxu0 0.0
        %1514 = vmatpush1.msra.mxu0 0.0
        %1515 = vmatprep.subr.mxu0 0.0
        %1516 = vmatpush1.msra.mxu0 0.0
        %1517 = vmatprep.subr.mxu0 0.0
        %1518 = vmatpush1.msra.mxu0 0.0
        %1519 = vmatprep.subr.mxu0 0.0
        %1520 = vmatpush1.msra.mxu0 0.0
        %1521 = vmatprep.subr.mxu0 0.0
        %1522 = vmatpush1.msra.mxu0 0.0
        %1523 = vmatprep.subr.mxu0 0.0
        %1524 = vmatpush1.msra.mxu0 0.0
        %1525 = vmatprep.subr.mxu0 0.0
        %1526 = vmatpush1.msra.mxu0 0.0
        %1527 = vmatprep.subr.mxu0 0.0
        %1528 = vmatpush1.msra.mxu0 0.0
        %1529 = vmatprep.subr.mxu0 0.0
        %1530 = vmatpush1.msra.mxu0 0.0
        %1531 = vmatprep.subr.mxu0 0.0
        %1532 = vmatpush1.msra.mxu0 0.0
        %1533 = vmatprep.subr.mxu0 0.0
        %1534 = vmatpush1.msra.mxu0 0.0
        %1535 = vmatprep.subr.mxu0 0.0
        %1536 = vmatpush1.msra.mxu0 0.0
        %1537 = vmatprep.subr.mxu0 0.0
        %1538 = vmatpush1.msra.mxu0 0.0
        %1539 = vmatprep.subr.mxu0 0.0
        %1540 = vmatpush1.msra.mxu0 0.0
        %1541 = vmatprep.subr.mxu0 0.0
        %1542 = vmatpush1.msra.mxu0 0.0
        %1543 = vmatprep.subr.mxu0 0.0
        %1544 = vmatpush1.msra.mxu0 0.0
        %1545 = vmatprep.subr.mxu0 0.0
        %1546 = vmatpush1.msra.mxu0 0.0
        %1547 = vmatprep.subr.mxu0 0.0
        %1548 = vmatpush1.msra.mxu0 0.0
        %1549 = vmatprep.mubr.f32.mxu0 0.0
        %1550 = vmatmul.mubr.f32.gmra.mrb[0].mxu0 %v1466
        %v1551 = vpop.f32.mrb[0].mxu0
        %v1552 = vadd.f32 0.0, %v1551
        %v1553 = vpop.f32.mrb[0].mxu0
        %1554 = vmatprep.mubr.f32.mxu0 0.0
        %1555 = vmatmul.mubr.f32.gmra.mrb[0].mxu0 %v1468
        %v1556 = vpop.f32.mrb[0].mxu0
        %v1557 = vadd.f32 0.0, %v1556
        %v1558 = vpop.f32.mrb[0].mxu0
        %1559 = vmatprep.mubr.f32.mxu0 0.0
        %1560 = vmatmul.mubr.f32.gmra.mrb[0].mxu0 %v1470
        %v1561 = vpop.f32.mrb[0].mxu0
        %v1562 = vadd.f32 0.0, %v1561
        %v1563 = vpop.f32.mrb[0].mxu0
        %1564 = vmatprep.mubr.f32.mxu0 0.0
        %1565 = vmatmul.mubr.f32.gmra.mrb[0].mxu0 %v1472
        %v1566 = vpop.f32.mrb[0].mxu0
        %v1567 = vadd.f32 0.0, %v1566
        %v1568 = vpop.f32.mrb[0].mxu0
        %1569 = vmatprep.mubr.f32.mxu0 0.0
        %1570 = vmatmul.mubr.f32.gmra.mrb[0].mxu0 %v1474
        %v1571 = vpop.f32.mrb[0].mxu0
        %v1572 = vadd.f32 0.0, %v1571
        %v1573 = vpop.f32.mrb[0].mxu0
        %1574 = vmatprep.mubr.f32.mxu0 0.0
        %1575 = vmatmul.mubr.f32.gmra.mrb[0].mxu0 %v1476
        %v1576 = vpop.f32.mrb[0].mxu0
        %v1577 = vadd.f32 0.0, %v1576
        %v1578 = vpop.f32.mrb[0].mxu0
        %1579 = vmatprep.mubr.f32.mxu0 0.0
        %1580 = vmatmul.mubr.f32.gmra.mrb[0].mxu0 %v1478
        %v1581 = vpop.f32.mrb[0].mxu0
        %v1582 = vadd.f32 0.0, %v1581
        %v1583 = vpop.f32.mrb[0].mxu0
        %1584 = vmatprep.mubr.f32.mxu0 0.0
        %1585 = vmatmul.mubr.f32.gmra.mrb[0].mxu0 %v1480
        %v1586 = vpop.f32.mrb[0].mxu0
        %v1587 = vadd.f32 0.0, %v1586
        %v1588 = vpop.f32.mrb[0].mxu0
        %1589 = vdwg.mxu0
        %v1590 = vadd.f32 %v1436, %v1552
        %v1591 = vadd.f32 %v1437, %v1557
        %v1592 = vadd.f32 %v1438, %v1562
        %v1593 = vadd.f32 %v1439, %v1567
        %v1594 = vadd.f32 %v1440, %v1572
        %v1595 = vadd.f32 %v1441, %v1577
        %v1596 = vadd.f32 %v1442, %v1582
        %v1597 = vadd.f32 %v1443, %v1587
        %1598 = vst [vmem:[%s187] sm:$0xff] %v1590
        %1599 = vst [vmem:[%s187 + $0x8] sm:$0xff] %v1591
        %1600 = vst [vmem:[%s187 + $0x10] sm:$0xff] %v1592
        %1601 = vst [vmem:[%s187 + $0x18] sm:$0xff] %v1593
        %1602 = vst [vmem:[%s187 + $0x20] sm:$0xff] %v1594
        %1603 = vst [vmem:[%s187 + $0x28] sm:$0xff] %v1595
        %1604 = vst [vmem:[%s187 + $0x30] sm:$0xff] %v1596
        %1605 = vst [vmem:[%s187 + $0x38] sm:$0xff] %v1597
        %v1606 = vadd.f32 %v1590, %v1591
        %v1607 = vadd.f32 %v1606, %v1592
        %v1608 = vadd.f32 %v1607, %v1593
        %v1609 = vadd.f32 %v1608, %v1594
        %v1610 = vadd.f32 %v1609, %v1595
        %v1611 = vadd.f32 %v1610, %v1596
        %v1612 = vadd.f32 %v1611, %v1597
        %v1613 = vrot.slane %v1612, 4
        %v1614 = vadd.f32 %v1612, %v1613
        %v1615 = vrot.slane %v1614, 2
        %v1616 = vadd.f32 %v1614, %v1615
        %v1617 = vrot.slane %v1616, 1
        %v1618 = vadd.f32 %v1616, %v1617
        %v1619 = vmul.f32 %v1590, %v1590
        %v1620 = vmul.f32 %v1591, %v1591
        %v1621 = vmul.f32 %v1592, %v1592
        %v1622 = vmul.f32 %v1593, %v1593
        %v1623 = vmul.f32 %v1594, %v1594
        %v1624 = vmul.f32 %v1595, %v1595
        %v1625 = vmul.f32 %v1596, %v1596
        %v1626 = vmul.f32 %v1597, %v1597
        %v1627 = vadd.f32 %v1619, %v1620
        %v1628 = vadd.f32 %v1627, %v1621
        %v1629 = vadd.f32 %v1628, %v1622
        %v1630 = vadd.f32 %v1629, %v1623
        %v1631 = vadd.f32 %v1630, %v1624
        %v1632 = vadd.f32 %v1631, %v1625
        %v1633 = vadd.f32 %v1632, %v1626
        %v1634 = vrot.slane %v1633, 4
        %v1635 = vadd.f32 %v1633, %v1634
        %v1636 = vrot.slane %v1635, 2
        %v1637 = vadd.f32 %v1635, %v1636
        %v1638 = vrot.slane %v1637, 1
        %v1639 = vadd.f32 %v1637, %v1638
        %vm1640 = vcmask 1040384
        %v1641 = vsel %vm1640, %v1618, %v1639
        %vm1642 = vcmask 1041408
        %v1643 = vsel %vm1642, %v1641, 0.0
        %1644 = vst [vmem:[%s194] sm:$0xff] %v1643
        %s1645 = sand.u32 %s92, 1
        %s1646 = scalar_lea.sflag [#allocation3], %s1645
        %s1647 = sand.u32 %s92, 1
        %s1648 = smul.addr %s1647, 64
        %s1649 = scalar_lea.vmem [#allocation2], %s1648
        %s1650 = sand.u32 %s122, 1
        %s1651 = scalar_lea.sflag [#allocation5], %s1650
        %s1652 = sand.u32 %s122, 1
        %s1653 = smul.addr %s1652, 8
        %s1654 = scalar_lea.vmem [#allocation4], %s1653
        // Predicated region
        $region29: #{tpu_custom_call.1} parent=27 // pred_check
          %p1655 = pneg %p102
        $region30: #{tpu_custom_call.1} parent=27 // pred_check_branch
          %1657 = sbr.rel (%p1655) target = $region32
        $region31: #{tpu_custom_call.1} parent=27 // pred_region
          %s1658 = smul.u32 %s25, 4
          %s1659 = sadd.s32 %s1658, %s26
          %s1661 = ssub.s32 1024, 1024
          %1662 = vsyncadd %s1646, %s1661
          %s1663 = smul.addr %s1659, 8
          %s1664 = smul.addr %s1663, 128
          %s1665 = scalar_lea.hbm %s2, %s1664
          %s1666 = sshll.u32 %s1649, 4
          %s1667 = int_to_ptr.vmem [resolvable:$true] %s1666
          %1672 = dma.vmem_to_hbm [thread:$0]  %s1667, 1024, %s1665, %s1646, 128, 128, 8
        $region32: #{tpu_custom_call.1} parent=27 // pred_fallthru
          _
        // Predicated region
        $region33: #{tpu_custom_call.1} parent=27 // pred_check
          %p1673 = pneg %p132
        $region34: #{tpu_custom_call.1} parent=27 // pred_check_branch
          %1675 = sbr.rel (%p1673) target = $region36
        $region35: #{tpu_custom_call.1} parent=27 // pred_region
          %s1676 = smul.u32 %s25, 4
          %s1677 = sadd.s32 %s1676, %s26
          %s1679 = ssub.s32 128, 128
          %1680 = vsyncadd %s1651, %s1679
          %s1681 = smul.addr %s1677, 128
          %s1682 = scalar_lea.hbm %s3, %s1681
          %s1684 = sshll.u32 %s1654, 4
          %s1685 = int_to_ptr.vmem [resolvable:$true] %s1684
          %1687 = dma.vmem_to_hbm [thread:$0]  %s1685, 128, %s1682, %s1651
        $region36: #{tpu_custom_call.1} parent=27 // pred_fallthru
          _
      $region28: #{tpu_custom_call.1} parent=5 // pred_fallthru
        _
      %p1688 = scmp.le.s32.totalorder 2, %s16
      // Predicated region
      $region37: #{tpu_custom_call.1} parent=5 // pred_check
        %p1689 = pneg %p1688
      $region38: #{tpu_custom_call.1} parent=5 // pred_check_branch
        %1691 = sbr.rel (%p1689) target = $region40
      $region39: #{tpu_custom_call.1} parent=5 // pred_region
        %s1692 = ssub.s32 %s16, 2
        // Predicated region
        $region41: #{tpu_custom_call.1} parent=39 // pred_check
          %p1693 = pneg %p108
        $region42: #{tpu_custom_call.1} parent=39 // pred_check_branch
          %1695 = sbr.rel (%p1693) target = $region44
        $region43: #{tpu_custom_call.1} parent=39 // pred_region
          %s1696 = sand.u32 %s93, 1
          %s1697 = scalar_lea.sflag [#allocation3], %s1696
          %s1698 = sand.u32 %s93, 1
          %s1699 = smul.addr %s1698, 64
          %s1700 = scalar_lea.vmem [#allocation2], %s1699
          %1701 = dma.done %s1697, 1024
        $region44: #{tpu_custom_call.1} parent=39 // pred_fallthru
          _
        // Predicated region
        $region45: #{tpu_custom_call.1} parent=39 // pred_check
          %p1702 = pneg %p138
        $region46: #{tpu_custom_call.1} parent=39 // pred_check_branch
          %1704 = sbr.rel (%p1702) target = $region48
        $region47: #{tpu_custom_call.1} parent=39 // pred_region
          %s1705 = sand.u32 %s123, 1
          %s1706 = scalar_lea.sflag [#allocation5], %s1705
          %s1707 = sand.u32 %s123, 1
          %s1708 = smul.addr %s1707, 8
          %s1709 = scalar_lea.vmem [#allocation4], %s1708
          %1710 = dma.done %s1706, 128
        $region48: #{tpu_custom_call.1} parent=39 // pred_fallthru
          _
      $region40: #{tpu_custom_call.1} parent=5 // pred_fallthru
        _
    $region6: #{tpu_custom_call.1} parent=1 // loop_footer
      %s20 = sadd.s32 1, %s16
    $region7: #{tpu_custom_call.1} parent=1 // loop_footer_branch
      %15 = sbr.rel target = $region3
    $region8: #{tpu_custom_call.1} parent=1 // loop_exit
      _
    %1711 = vsyncpa [#allocation3], 1
    %s1712 = scalar_lea.sflag [#allocation3], 1
    %1713 = vsyncpa %s1712, 1
    %1714 = vsyncpa [#allocation5], 1
    %s1715 = scalar_lea.sflag [#allocation5], 1
    %1716 = vsyncpa %s1715, 1

</llo_original>
